<compile_context>
chip_gen: v5e
topology: v5e:2x2
jax: 0.10.0
libtpu: 0.0.40
codegen_flags: <defaults>
</compile_context>

<pallas_src>
import jax
import jax.numpy as jnp
from jax.experimental import pallas as pl
from jax.experimental.pallas import tpu as pltpu

LANE = 128


def _round_up(x, m):
    return ((x + m - 1) // m) * m


# ----------------------------------------------------------------------------
# One-time parameter prepack (hoisted out of the per-step forward).
# ----------------------------------------------------------------------------
def prepack_params(params, *, max_vocab_tile=1024):
    H = params["w_hh"].shape[1]
    V = params["emb"].shape[0]
    Hp = _round_up(H, LANE)

    TN = min(max_vocab_tile, _round_up(V, LANE))
    Vp = _round_up(V, TN)
    n_tiles = Vp // TN
    if n_tiles > 1 and n_tiles % 2 == 1:
        # v7x: prefer an even vocab-tile count so the "parallel" vocab axis
        # splits evenly across the two TensorCores.
        TN = max(LANE, (TN // 2 // LANE) * LANE)
        Vp = _round_up(V, TN)

    w_ih_t = params["w_ih"].T.astype(jnp.bfloat16)                # (H, 4H)
    w_hh_t = params["w_hh"].T.astype(jnp.bfloat16)                # (H, 4H)
    b = (params["b_ih"] + params["b_hh"]).reshape(1, 4 * H).astype(jnp.float32)

    # Projection weight laid out to match the padded [attn_out|pad|h1|pad] slab.
    lin_w_t = params["lin_w"].T.astype(jnp.float32)               # (2H, V)
    w_cat = jnp.zeros((2 * Hp, Vp), jnp.float32)
    w_cat = w_cat.at[0:H, 0:V].set(lin_w_t[0:H])                  # attn_output half
    w_cat = w_cat.at[Hp:Hp + H, 0:V].set(lin_w_t[H:2 * H])        # decoder_output half
    w_cat = w_cat.astype(jnp.bfloat16)
    lin_b_p = jnp.zeros((1, Vp), jnp.float32).at[0, 0:V].set(
        params["lin_b"].astype(jnp.float32))

    return {
        "emb": params["emb"].astype(jnp.float32),   # (V, H), stays in HBM
        "w_ih_t": w_ih_t, "w_hh_t": w_hh_t, "b": b,
        "w_cat": w_cat, "lin_b_p": lin_b_p,
        "H": H, "V": V, "Hp": Hp, "TN": TN, "Vp": Vp,
    }


# ----------------------------------------------------------------------------
# Kernel A: embedding gather + LSTM cell + attention (small, runs once).
# ----------------------------------------------------------------------------
def lstm_attn_kernel(
    tok_ref,        # SMEM (B,)       int32  scalar-prefetch token ids
    h0_ref,         # VMEM (B, H)     f32
    c0_ref,         # VMEM (B, H)     f32
    enc_ref,        # VMEM (B, S, H)  f32 (or bf16 from the caller)
    emb_hbm,        # ANY  (V, H)     f32    embedding table (stays in HBM)
    w_ih_t_ref,     # VMEM (H, 4H)    bf16
    w_hh_t_ref,     # VMEM (H, 4H)    bf16
    b_ref,          # VMEM (1, 4H)    f32    b_ih + b_hh
    cat_ref,        # out  (B, 2*Hp)  f32    [attn_out | pad | h1 | pad]
    state_ref,      # out  (B, 2*Hp)  f32    [h1 | pad | c1 | pad]
    attn_ref,       # out  (B, Sp)    f32    [attn | pad]
    emb_vmem,       # scratch VMEM (B, H) f32
    gather_sem,     # scratch DMA semaphore (1,)
):
    B, H = h0_ref.shape
    S = enc_ref.shape[1]
    Hp = cat_ref.shape[1] // 2

    # ---- Embedding gather: B row DMAs from HBM, all on ONE semaphore.
    # Token scalars are only read here, before any wait. ----
    for b in range(B):
        pltpu.make_async_copy(
            emb_hbm.at[pl.ds(tok_ref[b], 1)],
            emb_vmem.at[pl.ds(b, 1)],
            gather_sem.at[0]).start()
    # TODO(synk): nn.Dropout is constructed in __init__ but never applied in
    # forward(), so no dropout is implemented here.

    # Pre-zero the pad lanes of all outputs once (overlaps with the DMAs).
    cat_ref[...] = jnp.zeros_like(cat_ref)
    state_ref[...] = jnp.zeros_like(state_ref)
    attn_ref[...] = jnp.zeros_like(attn_ref)

    # Hidden->gates matmul overlaps with the embedding-row DMAs.
    h0 = h0_ref[...]
    c0 = c0_ref[...]
    gates = (
        jnp.dot(h0.astype(jnp.bfloat16), w_hh_t_ref[...],
                preferred_element_type=jnp.float32)
        + b_ref[...]
    )                                                       # (B, 4H) f32

    # Wait for all B row copies (same shape each; static src slice so no
    # scalar re-reads are interleaved with the waits).
    for b in range(B):
        pltpu.make_async_copy(
            emb_hbm.at[pl.ds(0, 1)],
            emb_vmem.at[pl.ds(b, 1)],
            gather_sem.at[0]).wait()
    emb = emb_vmem[...].astype(jnp.bfloat16)                # (B, H)

    # ---- Single-step LSTM cell (PyTorch gate order: i, f, g, o). ----
    gates = gates + jnp.dot(emb, w_ih_t_ref[...],
                            preferred_element_type=jnp.float32)
    # NOTE: choose H % 128 == 0 in production so gate slices are full-lane.
    i_g = jax.nn.sigmoid(gates[:, 0 * H:1 * H])
    f_g = jax.nn.sigmoid(gates[:, 1 * H:2 * H])
    g_g = jnp.tanh(gates[:, 2 * H:3 * H])
    o_g = jax.nn.sigmoid(gates[:, 3 * H:4 * H])
    c1 = f_g * c0 + i_g * g_g
    h1 = o_g * jnp.tanh(c1)                                 # (B, H) f32

    # ---- Attention on VPU/XLU (q=1: never feed 1-row matmuls to the MXU).
    # enc may be stored bf16 by the caller; math is always f32. ----
    enc = enc_ref[...].astype(jnp.float32)                  # (B, S, H)
    scores = jnp.sum(enc * h1[:, None, :], axis=-1)         # (B, S)
    m = jnp.max(scores, axis=-1, keepdims=True)
    e = jnp.exp(scores - m)
    denom = jnp.sum(e, axis=-1, keepdims=True)
    attn = e * pl.reciprocal(denom, approx=True)            # (B, S)
    attn_out = jnp.sum(attn[:, :, None] * enc, axis=1)      # (B, H)

    # ---- Direct slab writes (pad lanes already zeroed above). ----
    cat_ref[:, 0:H] = attn_out
    cat_ref[:, Hp:Hp + H] = h1
    state_ref[:, 0:H] = h1
    state_ref[:, Hp:Hp + H] = c1
    attn_ref[:, 0:S] = attn


# ----------------------------------------------------------------------------
# Kernel B: output projection, tiled over the vocab dimension.
# ----------------------------------------------------------------------------
def proj_kernel(cat_ref, w_ref, b_ref, out_ref):
    # (B, 2Hp) @ (2Hp, TN) per vocab tile; bf16 MXU operands, f32 accumulation.
    out_ref[...] = (
        jnp.dot(cat_ref[...].astype(jnp.bfloat16), w_ref[...],
                preferred_element_type=jnp.float32)
        + b_ref[...])


# ----------------------------------------------------------------------------
# Per-step forward (parameters already prepacked).
# ----------------------------------------------------------------------------
def attn_decoder_forward(tokens, prev_hidden, encoder_outputs, packed):
    """Pallas version of AttnDecoderRNN.forward (single decode step).

    tokens:          (B, 1) int32
    prev_hidden:     ((1, B, H), (1, B, H)) f32   -- (h0, c0)
    encoder_outputs: (B, S, H) f32 (bf16 also accepted)
    packed:          output of prepack_params()
    returns: output (B, 1, V), hidden ((1,B,H),(1,B,H)), attn_weights (B, S, 1)
    """
    h0 = prev_hidden[0][0]                # (B, H)
    c0 = prev_hidden[1][0]                # (B, H)
    B = tokens.shape[0]
    S = encoder_outputs.shape[1]
    H, V = packed["H"], packed["V"]
    Hp, TN, Vp = packed["Hp"], packed["TN"], packed["Vp"]
    Sp = _round_up(S, LANE)

    vmem = pl.BlockSpec(memory_space=pltpu.MemorySpace.VMEM)
    hbm = pl.BlockSpec(memory_space=pl.ANY)

    # ---- Kernel A: embedding gather + LSTM cell + attention. ----
    cat_p, state_p, attn_p = pl.pallas_call(
        lstm_attn_kernel,
        grid_spec=pltpu.PrefetchScalarGridSpec(
            num_scalar_prefetch=1,
            grid=(1,),
            in_specs=[vmem, vmem, vmem, hbm, vmem, vmem, vmem],
            out_specs=(vmem, vmem, vmem),
            scratch_shapes=[pltpu.VMEM((B, H), jnp.float32),
                            pltpu.SemaphoreType.DMA((1,))]),
        out_shape=(jax.ShapeDtypeStruct((B, 2 * Hp), jnp.float32),
                   jax.ShapeDtypeStruct((B, 2 * Hp), jnp.float32),
                   jax.ShapeDtypeStruct((B, Sp), jnp.float32)),
        compiler_params=pltpu.CompilerParams(
            dimension_semantics=("arbitrary",)),
    )(tokens.reshape(B).astype(jnp.int32),
      h0, c0, encoder_outputs, packed["emb"],
      packed["w_ih_t"], packed["w_hh_t"], packed["b"])

    # ---- Kernel B: vocab-tiled projection (parallel grid -> v7x dual-TC). ----
    # VMEM budget: double-buffered bf16 weight tile + f32 bias/out tiles + cat.
    proj_vmem = (2 * (2 * Hp * TN * 2) + 2 * (TN * 4) + 2 * (B * TN * 4)
                 + 2 * (B * 2 * Hp * 4))
    proj_vmem = int(min(64 * 1024 * 1024, max(2 * proj_vmem, 8 * 1024 * 1024)))

    logits_p = pl.pallas_call(
        proj_kernel,
        out_shape=jax.ShapeDtypeStruct((B, Vp), jnp.float32),
        grid=(Vp // TN,),
        in_specs=[pl.BlockSpec((B, 2 * Hp), lambda j: (0, 0)),
                  pl.BlockSpec((2 * Hp, TN), lambda j: (0, j)),
                  pl.BlockSpec((1, TN), lambda j: (0, j))],
        out_specs=pl.BlockSpec((B, TN), lambda j: (0, j)),
        compiler_params=pltpu.CompilerParams(
            dimension_semantics=("parallel",),
            vmem_limit_bytes=proj_vmem),
        cost_estimate=pl.CostEstimate(
            flops=2 * B * (2 * Hp) * Vp,
            transcendentals=0,
            bytes_accessed=(2 * Hp) * Vp * 2 + B * 2 * Hp * 4
                           + Vp * 4 + B * Vp * 4),
    )(cat_p, packed["w_cat"], packed["lin_b_p"])

    output = logits_p[:, :V].reshape(B, 1, V)
    hidden = (state_p[:, :H].reshape(1, B, H),
              state_p[:, Hp:Hp + H].reshape(1, B, H))
    attn_weights = attn_p[:, :S].reshape(B, S, 1)
    return output, hidden, attn_weights


# ----------------------------------------------------------------------------
# Pure-JAX reference (mirrors the PyTorch forward exactly, all f32).
# ----------------------------------------------------------------------------
def reference_forward(tokens, prev_hidden, encoder_outputs, params):
    h0 = prev_hidden[0][0]
    c0 = prev_hidden[1][0]
    H = h0.shape[1]

    emb = params["emb"][tokens[:, 0]]                               # (B, H)
    gates = (emb @ params["w_ih"].T + params["b_ih"]
             + h0 @ params["w_hh"].T + params["b_hh"])              # (B, 4H)
    i = jax.nn.sigmoid(gates[:, 0 * H:1 * H])
    f = jax.nn.sigmoid(gates[:, 1 * H:2 * H])
    g = jnp.tanh(gates[:, 2 * H:3 * H])
    o = jax.nn.sigmoid(gates[:, 3 * H:4 * H])
    c1 = f * c0 + i * g
    h1 = o * jnp.tanh(c1)                                           # (B, H)

    dec = h1[:, None, :]                                            # (B, 1, H)
    attn_score = jnp.einsum("bsh,bqh->bsq", encoder_outputs, dec)   # (B, S, 1)
    attn_weights = jax.nn.softmax(attn_score, axis=1)               # (B, S, 1)
    attn_output = jnp.einsum("bqs,bsh->bqh",
                             jnp.swapaxes(attn_weights, 1, 2),
                             encoder_outputs)                       # (B, 1, H)
    cat = jnp.concatenate([attn_output, dec], axis=2)               # (B, 1, 2H)
    output = cat @ params["lin_w"].T + params["lin_b"]              # (B, 1, V)
    return output, (h1[None], c1[None]), attn_weights


def init_params(key, hidden_size, output_size):
    H, V = hidden_size, output_size
    ks = jax.random.split(key, 8)
    scale = 1.0 / jnp.sqrt(H)
    u = lambda k, shape: jax.random.uniform(k, shape, jnp.float32, -scale, scale)
    return {
        "emb":   jax.random.normal(ks[0], (V, H), jnp.float32),
        "w_ih":  u(ks[1], (4 * H, H)),
        "w_hh":  u(ks[2], (4 * H, H)),
        "b_ih":  u(ks[3], (4 * H,)),
        "b_hh":  u(ks[4], (4 * H,)),
        "lin_w": u(ks[5], (V, 2 * H)),
        "lin_b": u(ks[6], (V,)),
    }


if __name__ == "__main__":
    B, S, H, V = 8, 16, 32, 64   # batch, encoder seq len, hidden_size, output_size

    key = jax.random.PRNGKey(0)
    k_params, k_tok, k_h, k_c, k_enc = jax.random.split(key, 5)

    params = init_params(k_params, H, V)
    packed = prepack_params(params)     # one-time prep, outside the decode step

    tokens = jax.random.randint(k_tok, (B, 1), 0, V, dtype=jnp.int32)
    h0 = jax.random.normal(k_h, (1, B, H), jnp.float32) * 0.1
    c0 = jax.random.normal(k_c, (1, B, H), jnp.float32) * 0.1
    encoder_outputs = jax.random.normal(k_enc, (B, S, H), jnp.float32)

    out, (h1, c1), attn_w = attn_decoder_forward(
        tokens, (h0, c0), encoder_outputs, packed)
    jax.block_until_ready((out, h1, c1, attn_w))

    ref_out, (ref_h1, ref_c1), ref_attn = reference_forward(
        tokens, (h0, c0), encoder_outputs, params)

    assert out.shape == (B, 1, V) and h1.shape == (1, B, H)
    assert c1.shape == (1, B, H) and attn_w.shape == (B, S, 1)
    # bf16 MXU operands (f32 accumulation) => slightly looser logit tolerance.
    assert jnp.allclose(out, ref_out, rtol=2e-2, atol=3e-2)
    assert jnp.allclose(h1, ref_h1, rtol=2e-2, atol=2e-2)
    assert jnp.allclose(c1, ref_c1, rtol=2e-2, atol=2e-2)
    assert jnp.allclose(attn_w, ref_attn, rtol=2e-2, atol=2e-2)

    print("KERNEL_OK")
</pallas_src>

<mosaic_0001>
module attributes {stable_mosaic.version = 11 : i64} {
  func.func @lstm_attn_kernel(%arg0: i32, %arg1: memref<8xi32, #tpu.memory_space<smem>>, %arg2: memref<8x32xf32, #tpu.memory_space<vmem>>, %arg3: memref<8x32xf32, #tpu.memory_space<vmem>>, %arg4: memref<8x16x32xf32, #tpu.memory_space<vmem>>, %arg5: memref<64x32xf32, #tpu.memory_space<any>>, %arg6: memref<32x128xbf16, #tpu.memory_space<vmem>>, %arg7: memref<32x128xbf16, #tpu.memory_space<vmem>>, %arg8: memref<1x128xf32, #tpu.memory_space<vmem>>, %arg9: memref<8x256xf32, #tpu.memory_space<vmem>>, %arg10: memref<8x256xf32, #tpu.memory_space<vmem>>, %arg11: memref<8x128xf32, #tpu.memory_space<vmem>>, %arg12: memref<8x32xf32, #tpu.memory_space<vmem>>, %arg13: memref<1x!tpu.dma_semaphore, #tpu.memory_space<semaphore_mem>>) attributes {dimension_semantics = [#tpu.dimension_semantics<arbitrary>], iteration_bounds = array<i64: 1>, scalar_prefetch = 1 : i64, scratch_operands = 2 : i64, tpu.core_type = #tpu.core_type<tc>, window_params = [{pipeline_mode = #tpu.pipeline_mode<synchronous>, transform_indices = @transform_0, window_bounds = array<i64: 8, 32>}, {pipeline_mode = #tpu.pipeline_mode<synchronous>, transform_indices = @transform_1, window_bounds = array<i64: 8, 32>}, {pipeline_mode = #tpu.pipeline_mode<synchronous>, transform_indices = @transform_2, window_bounds = array<i64: 8, 16, 32>}, {}, {pipeline_mode = #tpu.pipeline_mode<synchronous>, transform_indices = @transform_4, window_bounds = array<i64: 32, 128>}, {pipeline_mode = #tpu.pipeline_mode<synchronous>, transform_indices = @transform_5, window_bounds = array<i64: 32, 128>}, {pipeline_mode = #tpu.pipeline_mode<synchronous>, transform_indices = @transform_6, window_bounds = array<i64: 1, 128>}, {pipeline_mode = #tpu.pipeline_mode<synchronous>, transform_indices = @transform_7, window_bounds = array<i64: 8, 256>}, {pipeline_mode = #tpu.pipeline_mode<synchronous>, transform_indices = @transform_8, window_bounds = array<i64: 8, 256>}, {pipeline_mode = #tpu.pipeline_mode<synchronous>, transform_indices = @transform_9, window_bounds = array<i64: 8, 128>}]} {
    %c0 = arith.constant 0 : index
    %0 = memref.load %arg1[%c0] : memref<8xi32, #tpu.memory_space<smem>>
    %c0_i32 = arith.constant 0 : i32
    %c0_i32_0 = arith.constant 0 : i32
    %1 = tpu.memref_slice %arg5[%0, %c0_i32_0] : memref<64x32xf32, #tpu.memory_space<any>> -> memref<1x32xf32, #tpu.memory_space<any>>
    %c0_i32_1 = arith.constant 0 : i32
    %c0_i32_2 = arith.constant 0 : i32
    %2 = tpu.memref_slice %arg12[%c0_i32_1, %c0_i32_2] : memref<8x32xf32, #tpu.memory_space<vmem>> -> memref<1x32xf32, #tpu.memory_space<vmem>>
    %3 = tpu.memref_slice %arg13[%c0_i32] : memref<1x!tpu.dma_semaphore, #tpu.memory_space<semaphore_mem>> -> memref<1x!tpu.dma_semaphore, #tpu.memory_space<semaphore_mem>>
    %4 = tpu.memref_squeeze %3 : memref<1x!tpu.dma_semaphore, #tpu.memory_space<semaphore_mem>> -> memref<!tpu.dma_semaphore, #tpu.memory_space<semaphore_mem>>
    tpu.enqueue_dma source(%1 : memref<1x32xf32, #tpu.memory_space<any>>) target(%2 : memref<1x32xf32, #tpu.memory_space<vmem>>) target_semaphore(%4 : memref<!tpu.dma_semaphore, #tpu.memory_space<semaphore_mem>>)
    %c1 = arith.constant 1 : index
    %5 = memref.load %arg1[%c1] : memref<8xi32, #tpu.memory_space<smem>>
    %c0_i32_3 = arith.constant 0 : i32
    %c0_i32_4 = arith.constant 0 : i32
    %6 = tpu.memref_slice %arg5[%5, %c0_i32_4] : memref<64x32xf32, #tpu.memory_space<any>> -> memref<1x32xf32, #tpu.memory_space<any>>
    %c1_i32 = arith.constant 1 : i32
    %c0_i32_5 = arith.constant 0 : i32
    %7 = tpu.memref_slice %arg12[%c1_i32, %c0_i32_5] : memref<8x32xf32, #tpu.memory_space<vmem>> -> memref<1x32xf32, #tpu.memory_space<vmem>>
    %8 = tpu.memref_slice %arg13[%c0_i32_3] : memref<1x!tpu.dma_semaphore, #tpu.memory_space<semaphore_mem>> -> memref<1x!tpu.dma_semaphore, #tpu.memory_space<semaphore_mem>>
    %9 = tpu.memref_squeeze %8 : memref<1x!tpu.dma_semaphore, #tpu.memory_space<semaphore_mem>> -> memref<!tpu.dma_semaphore, #tpu.memory_space<semaphore_mem>>
    tpu.enqueue_dma source(%6 : memref<1x32xf32, #tpu.memory_space<any>>) target(%7 : memref<1x32xf32, #tpu.memory_space<vmem>>) target_semaphore(%9 : memref<!tpu.dma_semaphore, #tpu.memory_space<semaphore_mem>>)
    %c2 = arith.constant 2 : index
    %10 = memref.load %arg1[%c2] : memref<8xi32, #tpu.memory_space<smem>>
    %c0_i32_6 = arith.constant 0 : i32
    %c0_i32_7 = arith.constant 0 : i32
    %11 = tpu.memref_slice %arg5[%10, %c0_i32_7] : memref<64x32xf32, #tpu.memory_space<any>> -> memref<1x32xf32, #tpu.memory_space<any>>
    %c2_i32 = arith.constant 2 : i32
    %c0_i32_8 = arith.constant 0 : i32
    %12 = tpu.memref_slice %arg12[%c2_i32, %c0_i32_8] : memref<8x32xf32, #tpu.memory_space<vmem>> -> memref<1x32xf32, #tpu.memory_space<vmem>>
    %13 = tpu.memref_slice %arg13[%c0_i32_6] : memref<1x!tpu.dma_semaphore, #tpu.memory_space<semaphore_mem>> -> memref<1x!tpu.dma_semaphore, #tpu.memory_space<semaphore_mem>>
    %14 = tpu.memref_squeeze %13 : memref<1x!tpu.dma_semaphore, #tpu.memory_space<semaphore_mem>> -> memref<!tpu.dma_semaphore, #tpu.memory_space<semaphore_mem>>
    tpu.enqueue_dma source(%11 : memref<1x32xf32, #tpu.memory_space<any>>) target(%12 : memref<1x32xf32, #tpu.memory_space<vmem>>) target_semaphore(%14 : memref<!tpu.dma_semaphore, #tpu.memory_space<semaphore_mem>>)
    %c3 = arith.constant 3 : index
    %15 = memref.load %arg1[%c3] : memref<8xi32, #tpu.memory_space<smem>>
    %c0_i32_9 = arith.constant 0 : i32
    %c0_i32_10 = arith.constant 0 : i32
    %16 = tpu.memref_slice %arg5[%15, %c0_i32_10] : memref<64x32xf32, #tpu.memory_space<any>> -> memref<1x32xf32, #tpu.memory_space<any>>
    %c3_i32 = arith.constant 3 : i32
    %c0_i32_11 = arith.constant 0 : i32
    %17 = tpu.memref_slice %arg12[%c3_i32, %c0_i32_11] : memref<8x32xf32, #tpu.memory_space<vmem>> -> memref<1x32xf32, #tpu.memory_space<vmem>>
    %18 = tpu.memref_slice %arg13[%c0_i32_9] : memref<1x!tpu.dma_semaphore, #tpu.memory_space<semaphore_mem>> -> memref<1x!tpu.dma_semaphore, #tpu.memory_space<semaphore_mem>>
    %19 = tpu.memref_squeeze %18 : memref<1x!tpu.dma_semaphore, #tpu.memory_space<semaphore_mem>> -> memref<!tpu.dma_semaphore, #tpu.memory_space<semaphore_mem>>
    tpu.enqueue_dma source(%16 : memref<1x32xf32, #tpu.memory_space<any>>) target(%17 : memref<1x32xf32, #tpu.memory_space<vmem>>) target_semaphore(%19 : memref<!tpu.dma_semaphore, #tpu.memory_space<semaphore_mem>>)
    %c4 = arith.constant 4 : index
    %20 = memref.load %arg1[%c4] : memref<8xi32, #tpu.memory_space<smem>>
    %c0_i32_12 = arith.constant 0 : i32
    %c0_i32_13 = arith.constant 0 : i32
    %21 = tpu.memref_slice %arg5[%20, %c0_i32_13] : memref<64x32xf32, #tpu.memory_space<any>> -> memref<1x32xf32, #tpu.memory_space<any>>
    %c4_i32 = arith.constant 4 : i32
    %c0_i32_14 = arith.constant 0 : i32
    %22 = tpu.memref_slice %arg12[%c4_i32, %c0_i32_14] : memref<8x32xf32, #tpu.memory_space<vmem>> -> memref<1x32xf32, #tpu.memory_space<vmem>>
    %23 = tpu.memref_slice %arg13[%c0_i32_12] : memref<1x!tpu.dma_semaphore, #tpu.memory_space<semaphore_mem>> -> memref<1x!tpu.dma_semaphore, #tpu.memory_space<semaphore_mem>>
    %24 = tpu.memref_squeeze %23 : memref<1x!tpu.dma_semaphore, #tpu.memory_space<semaphore_mem>> -> memref<!tpu.dma_semaphore, #tpu.memory_space<semaphore_mem>>
    tpu.enqueue_dma source(%21 : memref<1x32xf32, #tpu.memory_space<any>>) target(%22 : memref<1x32xf32, #tpu.memory_space<vmem>>) target_semaphore(%24 : memref<!tpu.dma_semaphore, #tpu.memory_space<semaphore_mem>>)
    %c5 = arith.constant 5 : index
    %25 = memref.load %arg1[%c5] : memref<8xi32, #tpu.memory_space<smem>>
    %c0_i32_15 = arith.constant 0 : i32
    %c0_i32_16 = arith.constant 0 : i32
    %26 = tpu.memref_slice %arg5[%25, %c0_i32_16] : memref<64x32xf32, #tpu.memory_space<any>> -> memref<1x32xf32, #tpu.memory_space<any>>
    %c5_i32 = arith.constant 5 : i32
    %c0_i32_17 = arith.constant 0 : i32
    %27 = tpu.memref_slice %arg12[%c5_i32, %c0_i32_17] : memref<8x32xf32, #tpu.memory_space<vmem>> -> memref<1x32xf32, #tpu.memory_space<vmem>>
    %28 = tpu.memref_slice %arg13[%c0_i32_15] : memref<1x!tpu.dma_semaphore, #tpu.memory_space<semaphore_mem>> -> memref<1x!tpu.dma_semaphore, #tpu.memory_space<semaphore_mem>>
    %29 = tpu.memref_squeeze %28 : memref<1x!tpu.dma_semaphore, #tpu.memory_space<semaphore_mem>> -> memref<!tpu.dma_semaphore, #tpu.memory_space<semaphore_mem>>
    tpu.enqueue_dma source(%26 : memref<1x32xf32, #tpu.memory_space<any>>) target(%27 : memref<1x32xf32, #tpu.memory_space<vmem>>) target_semaphore(%29 : memref<!tpu.dma_semaphore, #tpu.memory_space<semaphore_mem>>)
    %c6 = arith.constant 6 : index
    %30 = memref.load %arg1[%c6] : memref<8xi32, #tpu.memory_space<smem>>
    %c0_i32_18 = arith.constant 0 : i32
    %c0_i32_19 = arith.constant 0 : i32
    %31 = tpu.memref_slice %arg5[%30, %c0_i32_19] : memref<64x32xf32, #tpu.memory_space<any>> -> memref<1x32xf32, #tpu.memory_space<any>>
    %c6_i32 = arith.constant 6 : i32
    %c0_i32_20 = arith.constant 0 : i32
    %32 = tpu.memref_slice %arg12[%c6_i32, %c0_i32_20] : memref<8x32xf32, #tpu.memory_space<vmem>> -> memref<1x32xf32, #tpu.memory_space<vmem>>
    %33 = tpu.memref_slice %arg13[%c0_i32_18] : memref<1x!tpu.dma_semaphore, #tpu.memory_space<semaphore_mem>> -> memref<1x!tpu.dma_semaphore, #tpu.memory_space<semaphore_mem>>
    %34 = tpu.memref_squeeze %33 : memref<1x!tpu.dma_semaphore, #tpu.memory_space<semaphore_mem>> -> memref<!tpu.dma_semaphore, #tpu.memory_space<semaphore_mem>>
    tpu.enqueue_dma source(%31 : memref<1x32xf32, #tpu.memory_space<any>>) target(%32 : memref<1x32xf32, #tpu.memory_space<vmem>>) target_semaphore(%34 : memref<!tpu.dma_semaphore, #tpu.memory_space<semaphore_mem>>)
    %c7 = arith.constant 7 : index
    %35 = memref.load %arg1[%c7] : memref<8xi32, #tpu.memory_space<smem>>
    %c0_i32_21 = arith.constant 0 : i32
    %c0_i32_22 = arith.constant 0 : i32
    %36 = tpu.memref_slice %arg5[%35, %c0_i32_22] : memref<64x32xf32, #tpu.memory_space<any>> -> memref<1x32xf32, #tpu.memory_space<any>>
    %c7_i32 = arith.constant 7 : i32
    %c0_i32_23 = arith.constant 0 : i32
    %37 = tpu.memref_slice %arg12[%c7_i32, %c0_i32_23] : memref<8x32xf32, #tpu.memory_space<vmem>> -> memref<1x32xf32, #tpu.memory_space<vmem>>
    %38 = tpu.memref_slice %arg13[%c0_i32_21] : memref<1x!tpu.dma_semaphore, #tpu.memory_space<semaphore_mem>> -> memref<1x!tpu.dma_semaphore, #tpu.memory_space<semaphore_mem>>
    %39 = tpu.memref_squeeze %38 : memref<1x!tpu.dma_semaphore, #tpu.memory_space<semaphore_mem>> -> memref<!tpu.dma_semaphore, #tpu.memory_space<semaphore_mem>>
    tpu.enqueue_dma source(%36 : memref<1x32xf32, #tpu.memory_space<any>>) target(%37 : memref<1x32xf32, #tpu.memory_space<vmem>>) target_semaphore(%39 : memref<!tpu.dma_semaphore, #tpu.memory_space<semaphore_mem>>)
    %cst = arith.constant 0.000000e+00 : f32
    %40 = vector.broadcast %cst : f32 to vector<8x256xf32>
    %c0_24 = arith.constant 0 : index
    %c0_25 = arith.constant 0 : index
    %41 = vector.load %arg9[%c0_24, %c0_25] : memref<8x256xf32, #tpu.memory_space<vmem>>, vector<8x256xf32>
    tpu.vector_store %arg9[%c0_24, %c0_25], %40 {strides = array<i32>} : memref<8x256xf32, #tpu.memory_space<vmem>>, vector<8x256xf32>,
    %cst_26 = arith.constant 0.000000e+00 : f32
    %42 = vector.broadcast %cst_26 : f32 to vector<8x256xf32>
    %c0_27 = arith.constant 0 : index
    %c0_28 = arith.constant 0 : index
    %43 = vector.load %arg10[%c0_27, %c0_28] : memref<8x256xf32, #tpu.memory_space<vmem>>, vector<8x256xf32>
    tpu.vector_store %arg10[%c0_27, %c0_28], %42 {strides = array<i32>} : memref<8x256xf32, #tpu.memory_space<vmem>>, vector<8x256xf32>,
    %cst_29 = arith.constant 0.000000e+00 : f32
    %44 = vector.broadcast %cst_29 : f32 to vector<8x128xf32>
    %c0_30 = arith.constant 0 : index
    %c0_31 = arith.constant 0 : index
    %45 = vector.load %arg11[%c0_30, %c0_31] : memref<8x128xf32, #tpu.memory_space<vmem>>, vector<8x128xf32>
    tpu.vector_store %arg11[%c0_30, %c0_31], %44 {strides = array<i32>} : memref<8x128xf32, #tpu.memory_space<vmem>>, vector<8x128xf32>,
    %c0_32 = arith.constant 0 : index
    %c0_33 = arith.constant 0 : index
    %46 = vector.load %arg2[%c0_32, %c0_33] : memref<8x32xf32, #tpu.memory_space<vmem>>, vector<8x32xf32>
    %c0_34 = arith.constant 0 : index
    %c0_35 = arith.constant 0 : index
    %47 = vector.load %arg3[%c0_34, %c0_35] : memref<8x32xf32, #tpu.memory_space<vmem>>, vector<8x32xf32>
    %48 = arith.truncf %46 : vector<8x32xf32> to vector<8x32xbf16>
    %c0_36 = arith.constant 0 : index
    %c0_37 = arith.constant 0 : index
    %49 = vector.load %arg7[%c0_36, %c0_37] : memref<32x128xbf16, #tpu.memory_space<vmem>>, vector<32x128xbf16>
    %cst_38 = arith.constant dense<0.000000e+00> : vector<8x128xf32>
    %50 = tpu.matmul %48, %49, %cst_38 {dimension_numbers = #tpu.dot_dimension_numbers<[1], [0], [0], [1], [0, 0, 1, 1], [], []>} : vector<8x32xbf16>, vector<32x128xbf16>, vector<8x128xf32> -> vector<8x128xf32>
    %c0_39 = arith.constant 0 : index
    %c0_40 = arith.constant 0 : index
    %51 = vector.load %arg8[%c0_39, %c0_40] : memref<1x128xf32, #tpu.memory_space<vmem>>, vector<1x128xf32>
    %52 = vector.broadcast %51 : vector<1x128xf32> to vector<8x128xf32>
    %53 = arith.addf %50, %52 : vector<8x128xf32>
    %c0_i32_41 = arith.constant 0 : i32
    %c0_i32_42 = arith.constant 0 : i32
    %c0_i32_43 = arith.constant 0 : i32
    %54 = tpu.memref_slice %arg5[%c0_i32_42, %c0_i32_43] : memref<64x32xf32, #tpu.memory_space<any>> -> memref<1x32xf32, #tpu.memory_space<any>>
    %c0_i32_44 = arith.constant 0 : i32
    %c0_i32_45 = arith.constant 0 : i32
    %55 = tpu.memref_slice %arg12[%c0_i32_44, %c0_i32_45] : memref<8x32xf32, #tpu.memory_space<vmem>> -> memref<1x32xf32, #tpu.memory_space<vmem>>
    %56 = tpu.memref_slice %arg13[%c0_i32_41] : memref<1x!tpu.dma_semaphore, #tpu.memory_space<semaphore_mem>> -> memref<1x!tpu.dma_semaphore, #tpu.memory_space<semaphore_mem>>
    %57 = tpu.memref_squeeze %56 : memref<1x!tpu.dma_semaphore, #tpu.memory_space<semaphore_mem>> -> memref<!tpu.dma_semaphore, #tpu.memory_space<semaphore_mem>>
    tpu.wait_dma2 semaphore(%57 : memref<!tpu.dma_semaphore, #tpu.memory_space<semaphore_mem>>) src(%54 : memref<1x32xf32, #tpu.memory_space<any>>) dst(%55 : memref<1x32xf32, #tpu.memory_space<vmem>>)
    %c0_i32_46 = arith.constant 0 : i32
    %c0_i32_47 = arith.constant 0 : i32
    %c0_i32_48 = arith.constant 0 : i32
    %58 = tpu.memref_slice %arg5[%c0_i32_47, %c0_i32_48] : memref<64x32xf32, #tpu.memory_space<any>> -> memref<1x32xf32, #tpu.memory_space<any>>
    %c1_i32_49 = arith.constant 1 : i32
    %c0_i32_50 = arith.constant 0 : i32
    %59 = tpu.memref_slice %arg12[%c1_i32_49, %c0_i32_50] : memref<8x32xf32, #tpu.memory_space<vmem>> -> memref<1x32xf32, #tpu.memory_space<vmem>>
    %60 = tpu.memref_slice %arg13[%c0_i32_46] : memref<1x!tpu.dma_semaphore, #tpu.memory_space<semaphore_mem>> -> memref<1x!tpu.dma_semaphore, #tpu.memory_space<semaphore_mem>>
    %61 = tpu.memref_squeeze %60 : memref<1x!tpu.dma_semaphore, #tpu.memory_space<semaphore_mem>> -> memref<!tpu.dma_semaphore, #tpu.memory_space<semaphore_mem>>
    tpu.wait_dma2 semaphore(%61 : memref<!tpu.dma_semaphore, #tpu.memory_space<semaphore_mem>>) src(%58 : memref<1x32xf32, #tpu.memory_space<any>>) dst(%59 : memref<1x32xf32, #tpu.memory_space<vmem>>)
    %c0_i32_51 = arith.constant 0 : i32
    %c0_i32_52 = arith.constant 0 : i32
    %c0_i32_53 = arith.constant 0 : i32
    %62 = tpu.memref_slice %arg5[%c0_i32_52, %c0_i32_53] : memref<64x32xf32, #tpu.memory_space<any>> -> memref<1x32xf32, #tpu.memory_space<any>>
    %c2_i32_54 = arith.constant 2 : i32
    %c0_i32_55 = arith.constant 0 : i32
    %63 = tpu.memref_slice %arg12[%c2_i32_54, %c0_i32_55] : memref<8x32xf32, #tpu.memory_space<vmem>> -> memref<1x32xf32, #tpu.memory_space<vmem>>
    %64 = tpu.memref_slice %arg13[%c0_i32_51] : memref<1x!tpu.dma_semaphore, #tpu.memory_space<semaphore_mem>> -> memref<1x!tpu.dma_semaphore, #tpu.memory_space<semaphore_mem>>
    %65 = tpu.memref_squeeze %64 : memref<1x!tpu.dma_semaphore, #tpu.memory_space<semaphore_mem>> -> memref<!tpu.dma_semaphore, #tpu.memory_space<semaphore_mem>>
    tpu.wait_dma2 semaphore(%65 : memref<!tpu.dma_semaphore, #tpu.memory_space<semaphore_mem>>) src(%62 : memref<1x32xf32, #tpu.memory_space<any>>) dst(%63 : memref<1x32xf32, #tpu.memory_space<vmem>>)
    %c0_i32_56 = arith.constant 0 : i32
    %c0_i32_57 = arith.constant 0 : i32
    %c0_i32_58 = arith.constant 0 : i32
    %66 = tpu.memref_slice %arg5[%c0_i32_57, %c0_i32_58] : memref<64x32xf32, #tpu.memory_space<any>> -> memref<1x32xf32, #tpu.memory_space<any>>
    %c3_i32_59 = arith.constant 3 : i32
    %c0_i32_60 = arith.constant 0 : i32
    %67 = tpu.memref_slice %arg12[%c3_i32_59, %c0_i32_60] : memref<8x32xf32, #tpu.memory_space<vmem>> -> memref<1x32xf32, #tpu.memory_space<vmem>>
    %68 = tpu.memref_slice %arg13[%c0_i32_56] : memref<1x!tpu.dma_semaphore, #tpu.memory_space<semaphore_mem>> -> memref<1x!tpu.dma_semaphore, #tpu.memory_space<semaphore_mem>>
    %69 = tpu.memref_squeeze %68 : memref<1x!tpu.dma_semaphore, #tpu.memory_space<semaphore_mem>> -> memref<!tpu.dma_semaphore, #tpu.memory_space<semaphore_mem>>
    tpu.wait_dma2 semaphore(%69 : memref<!tpu.dma_semaphore, #tpu.memory_space<semaphore_mem>>) src(%66 : memref<1x32xf32, #tpu.memory_space<any>>) dst(%67 : memref<1x32xf32, #tpu.memory_space<vmem>>)
    %c0_i32_61 = arith.constant 0 : i32
    %c0_i32_62 = arith.constant 0 : i32
    %c0_i32_63 = arith.constant 0 : i32
    %70 = tpu.memref_slice %arg5[%c0_i32_62, %c0_i32_63] : memref<64x32xf32, #tpu.memory_space<any>> -> memref<1x32xf32, #tpu.memory_space<any>>
    %c4_i32_64 = arith.constant 4 : i32
    %c0_i32_65 = arith.constant 0 : i32
    %71 = tpu.memref_slice %arg12[%c4_i32_64, %c0_i32_65] : memref<8x32xf32, #tpu.memory_space<vmem>> -> memref<1x32xf32, #tpu.memory_space<vmem>>
    %72 = tpu.memref_slice %arg13[%c0_i32_61] : memref<1x!tpu.dma_semaphore, #tpu.memory_space<semaphore_mem>> -> memref<1x!tpu.dma_semaphore, #tpu.memory_space<semaphore_mem>>
    %73 = tpu.memref_squeeze %72 : memref<1x!tpu.dma_semaphore, #tpu.memory_space<semaphore_mem>> -> memref<!tpu.dma_semaphore, #tpu.memory_space<semaphore_mem>>
    tpu.wait_dma2 semaphore(%73 : memref<!tpu.dma_semaphore, #tpu.memory_space<semaphore_mem>>) src(%70 : memref<1x32xf32, #tpu.memory_space<any>>) dst(%71 : memref<1x32xf32, #tpu.memory_space<vmem>>)
    %c0_i32_66 = arith.constant 0 : i32
    %c0_i32_67 = arith.constant 0 : i32
    %c0_i32_68 = arith.constant 0 : i32
    %74 = tpu.memref_slice %arg5[%c0_i32_67, %c0_i32_68] : memref<64x32xf32, #tpu.memory_space<any>> -> memref<1x32xf32, #tpu.memory_space<any>>
    %c5_i32_69 = arith.constant 5 : i32
    %c0_i32_70 = arith.constant 0 : i32
    %75 = tpu.memref_slice %arg12[%c5_i32_69, %c0_i32_70] : memref<8x32xf32, #tpu.memory_space<vmem>> -> memref<1x32xf32, #tpu.memory_space<vmem>>
    %76 = tpu.memref_slice %arg13[%c0_i32_66] : memref<1x!tpu.dma_semaphore, #tpu.memory_space<semaphore_mem>> -> memref<1x!tpu.dma_semaphore, #tpu.memory_space<semaphore_mem>>
    %77 = tpu.memref_squeeze %76 : memref<1x!tpu.dma_semaphore, #tpu.memory_space<semaphore_mem>> -> memref<!tpu.dma_semaphore, #tpu.memory_space<semaphore_mem>>
    tpu.wait_dma2 semaphore(%77 : memref<!tpu.dma_semaphore, #tpu.memory_space<semaphore_mem>>) src(%74 : memref<1x32xf32, #tpu.memory_space<any>>) dst(%75 : memref<1x32xf32, #tpu.memory_space<vmem>>)
    %c0_i32_71 = arith.constant 0 : i32
    %c0_i32_72 = arith.constant 0 : i32
    %c0_i32_73 = arith.constant 0 : i32
    %78 = tpu.memref_slice %arg5[%c0_i32_72, %c0_i32_73] : memref<64x32xf32, #tpu.memory_space<any>> -> memref<1x32xf32, #tpu.memory_space<any>>
    %c6_i32_74 = arith.constant 6 : i32
    %c0_i32_75 = arith.constant 0 : i32
    %79 = tpu.memref_slice %arg12[%c6_i32_74, %c0_i32_75] : memref<8x32xf32, #tpu.memory_space<vmem>> -> memref<1x32xf32, #tpu.memory_space<vmem>>
    %80 = tpu.memref_slice %arg13[%c0_i32_71] : memref<1x!tpu.dma_semaphore, #tpu.memory_space<semaphore_mem>> -> memref<1x!tpu.dma_semaphore, #tpu.memory_space<semaphore_mem>>
    %81 = tpu.memref_squeeze %80 : memref<1x!tpu.dma_semaphore, #tpu.memory_space<semaphore_mem>> -> memref<!tpu.dma_semaphore, #tpu.memory_space<semaphore_mem>>
    tpu.wait_dma2 semaphore(%81 : memref<!tpu.dma_semaphore, #tpu.memory_space<semaphore_mem>>) src(%78 : memref<1x32xf32, #tpu.memory_space<any>>) dst(%79 : memref<1x32xf32, #tpu.memory_space<vmem>>)
    %c0_i32_76 = arith.constant 0 : i32
    %c0_i32_77 = arith.constant 0 : i32
    %c0_i32_78 = arith.constant 0 : i32
    %82 = tpu.memref_slice %arg5[%c0_i32_77, %c0_i32_78] : memref<64x32xf32, #tpu.memory_space<any>> -> memref<1x32xf32, #tpu.memory_space<any>>
    %c7_i32_79 = arith.constant 7 : i32
    %c0_i32_80 = arith.constant 0 : i32
    %83 = tpu.memref_slice %arg12[%c7_i32_79, %c0_i32_80] : memref<8x32xf32, #tpu.memory_space<vmem>> -> memref<1x32xf32, #tpu.memory_space<vmem>>
    %84 = tpu.memref_slice %arg13[%c0_i32_76] : memref<1x!tpu.dma_semaphore, #tpu.memory_space<semaphore_mem>> -> memref<1x!tpu.dma_semaphore, #tpu.memory_space<semaphore_mem>>
    %85 = tpu.memref_squeeze %84 : memref<1x!tpu.dma_semaphore, #tpu.memory_space<semaphore_mem>> -> memref<!tpu.dma_semaphore, #tpu.memory_space<semaphore_mem>>
    tpu.wait_dma2 semaphore(%85 : memref<!tpu.dma_semaphore, #tpu.memory_space<semaphore_mem>>) src(%82 : memref<1x32xf32, #tpu.memory_space<any>>) dst(%83 : memref<1x32xf32, #tpu.memory_space<vmem>>)
    %c0_81 = arith.constant 0 : index
    %c0_82 = arith.constant 0 : index
    %86 = vector.load %arg12[%c0_81, %c0_82] : memref<8x32xf32, #tpu.memory_space<vmem>>, vector<8x32xf32>
    %87 = arith.truncf %86 : vector<8x32xf32> to vector<8x32xbf16>
    %c0_83 = arith.constant 0 : index
    %c0_84 = arith.constant 0 : index
    %88 = vector.load %arg6[%c0_83, %c0_84] : memref<32x128xbf16, #tpu.memory_space<vmem>>, vector<32x128xbf16>
    %cst_85 = arith.constant dense<0.000000e+00> : vector<8x128xf32>
    %89 = tpu.matmul %87, %88, %cst_85 {dimension_numbers = #tpu.dot_dimension_numbers<[1], [0], [0], [1], [0, 0, 1, 1], [], []>} : vector<8x32xbf16>, vector<32x128xbf16>, vector<8x128xf32> -> vector<8x128xf32>
    %90 = arith.addf %53, %89 : vector<8x128xf32>
    %91 = vector.extract_strided_slice %90 {offsets = [0, 0], sizes = [8, 32], strides = [1, 1]} : vector<8x128xf32> to vector<8x32xf32>
    %92 = arith.negf %91 : vector<8x32xf32>
    %93 = math.exp %92 : vector<8x32xf32>
    %cst_86 = arith.constant 1.000000e+00 : f32
    %94 = vector.broadcast %cst_86 : f32 to vector<8x32xf32>
    %95 = arith.addf %94, %93 : vector<8x32xf32>
    %96 = arith.divf %94, %95 : vector<8x32xf32>
    %97 = vector.extract_strided_slice %90 {offsets = [0, 32], sizes = [8, 32], strides = [1, 1]} : vector<8x128xf32> to vector<8x32xf32>
    %98 = arith.negf %97 : vector<8x32xf32>
    %99 = math.exp %98 : vector<8x32xf32>
    %cst_87 = arith.constant 1.000000e+00 : f32
    %100 = vector.broadcast %cst_87 : f32 to vector<8x32xf32>
    %101 = arith.addf %100, %99 : vector<8x32xf32>
    %102 = arith.divf %100, %101 : vector<8x32xf32>
    %103 = vector.extract_strided_slice %90 {offsets = [0, 64], sizes = [8, 32], strides = [1, 1]} : vector<8x128xf32> to vector<8x32xf32>
    %104 = math.tanh %103 : vector<8x32xf32>
    %105 = vector.extract_strided_slice %90 {offsets = [0, 96], sizes = [8, 32], strides = [1, 1]} : vector<8x128xf32> to vector<8x32xf32>
    %106 = arith.negf %105 : vector<8x32xf32>
    %107 = math.exp %106 : vector<8x32xf32>
    %cst_88 = arith.constant 1.000000e+00 : f32
    %108 = vector.broadcast %cst_88 : f32 to vector<8x32xf32>
    %109 = arith.addf %108, %107 : vector<8x32xf32>
    %110 = arith.divf %108, %109 : vector<8x32xf32>
    %111 = arith.mulf %102, %47 : vector<8x32xf32>
    %112 = arith.mulf %96, %104 : vector<8x32xf32>
    %113 = arith.addf %111, %112 : vector<8x32xf32>
    %114 = math.tanh %113 : vector<8x32xf32>
    %115 = arith.mulf %110, %114 : vector<8x32xf32>
    %c0_89 = arith.constant 0 : index
    %c0_90 = arith.constant 0 : index
    %c0_91 = arith.constant 0 : index
    %116 = vector.load %arg4[%c0_89, %c0_90, %c0_91] : memref<8x16x32xf32, #tpu.memory_space<vmem>>, vector<8x16x32xf32>
    %117 = vector.shape_cast %115 : vector<8x32xf32> to vector<8x1x32xf32>
    %118 = vector.broadcast %117 : vector<8x1x32xf32> to vector<8x16x32xf32>
    %119 = arith.mulf %116, %118 : vector<8x16x32xf32>
    %cst_92 = arith.constant dense<0.000000e+00> : vector<8x16xf32>
    %120 = vector.multi_reduction <add>, %119, %cst_92 [2] : vector<8x16x32xf32> to vector<8x16xf32>
    %cst_93 = arith.constant dense<0xFF800000> : vector<8xf32>
    %121 = vector.multi_reduction <maximumf>, %120, %cst_93 [1] : vector<8x16xf32> to vector<8xf32>
    %122 = vector.shape_cast %121 : vector<8xf32> to vector<8x1xf32>
    %123 = vector.broadcast %122 : vector<8x1xf32> to vector<8x16xf32>
    %124 = arith.subf %120, %123 : vector<8x16xf32>
    %125 = math.exp %124 : vector<8x16xf32>
    %cst_94 = arith.constant dense<0.000000e+00> : vector<8xf32>
    %126 = vector.multi_reduction <add>, %125, %cst_94 [1] : vector<8x16xf32> to vector<8xf32>
    %127 = vector.shape_cast %126 : vector<8xf32> to vector<8x1xf32>
    %128 = tpu.reciprocal %127 {approx = true} : vector<8x1xf32> -> vector<8x1xf32>
    %129 = vector.broadcast %128 : vector<8x1xf32> to vector<8x16xf32>
    %130 = arith.mulf %125, %129 : vector<8x16xf32>
    %131 = vector.shape_cast %130 : vector<8x16xf32> to vector<8x16x1xf32>
    %132 = vector.broadcast %131 : vector<8x16x1xf32> to vector<8x16x32xf32>
    %133 = arith.mulf %132, %116 : vector<8x16x32xf32>
    %cst_95 = arith.constant dense<0.000000e+00> : vector<8x32xf32>
    %134 = vector.multi_reduction <add>, %133, %cst_95 [1] : vector<8x16x32xf32> to vector<8x32xf32>
    %c0_96 = arith.constant 0 : index
    %c0_97 = arith.constant 0 : index
    %135 = vector.load %arg9[%c0_96, %c0_97] : memref<8x256xf32, #tpu.memory_space<vmem>>, vector<8x32xf32>
    tpu.vector_store %arg9[%c0_96, %c0_97], %134 {strides = array<i32>} : memref<8x256xf32, #tpu.memory_space<vmem>>, vector<8x32xf32>,
    %c0_98 = arith.constant 0 : index
    %c128 = arith.constant 128 : index
    %136 = vector.load %arg9[%c0_98, %c128] : memref<8x256xf32, #tpu.memory_space<vmem>>, vector<8x32xf32>
    tpu.vector_store %arg9[%c0_98, %c128], %115 {strides = array<i32>} : memref<8x256xf32, #tpu.memory_space<vmem>>, vector<8x32xf32>,
    %c0_99 = arith.constant 0 : index
    %c0_100 = arith.constant 0 : index
    %137 = vector.load %arg10[%c0_99, %c0_100] : memref<8x256xf32, #tpu.memory_space<vmem>>, vector<8x32xf32>
    tpu.vector_store %arg10[%c0_99, %c0_100], %115 {strides = array<i32>} : memref<8x256xf32, #tpu.memory_space<vmem>>, vector<8x32xf32>,
    %c0_101 = arith.constant 0 : index
    %c128_102 = arith.constant 128 : index
    %138 = vector.load %arg10[%c0_101, %c128_102] : memref<8x256xf32, #tpu.memory_space<vmem>>, vector<8x32xf32>
    tpu.vector_store %arg10[%c0_101, %c128_102], %113 {strides = array<i32>} : memref<8x256xf32, #tpu.memory_space<vmem>>, vector<8x32xf32>,
    %c0_103 = arith.constant 0 : index
    %c0_104 = arith.constant 0 : index
    %139 = vector.load %arg11[%c0_103, %c0_104] : memref<8x128xf32, #tpu.memory_space<vmem>>, vector<8x16xf32>
    tpu.vector_store %arg11[%c0_103, %c0_104], %130 {strides = array<i32>} : memref<8x128xf32, #tpu.memory_space<vmem>>, vector<8x16xf32>,
    return
  }
  func.func @transform_0(%arg0: i32, %arg1: memref<8xi32, #tpu.memory_space<smem>>) -> (i32, i32) {
    %c0_i32 = arith.constant 0 : i32
    %c0_i32_0 = arith.constant 0 : i32
    %c0_i32_1 = arith.constant 0 : i32
    return %c0_i32, %c0_i32_0 : i32, i32
  }
  func.func @transform_1(%arg0: i32, %arg1: memref<8xi32, #tpu.memory_space<smem>>) -> (i32, i32) {
    %c0_i32 = arith.constant 0 : i32
    %c0_i32_0 = arith.constant 0 : i32
    %c0_i32_1 = arith.constant 0 : i32
    return %c0_i32, %c0_i32_0 : i32, i32
  }
  func.func @transform_2(%arg0: i32, %arg1: memref<8xi32, #tpu.memory_space<smem>>) -> (i32, i32, i32) {
    %c0_i32 = arith.constant 0 : i32
    %c0_i32_0 = arith.constant 0 : i32
    %c0_i32_1 = arith.constant 0 : i32
    %c0_i32_2 = arith.constant 0 : i32
    return %c0_i32, %c0_i32_0, %c0_i32_1 : i32, i32, i32
  }
  func.func @transform_4(%arg0: i32, %arg1: memref<8xi32, #tpu.memory_space<smem>>) -> (i32, i32) {
    %c0_i32 = arith.constant 0 : i32
    %c0_i32_0 = arith.constant 0 : i32
    %c0_i32_1 = arith.constant 0 : i32
    return %c0_i32, %c0_i32_0 : i32, i32
  }
  func.func @transform_5(%arg0: i32, %arg1: memref<8xi32, #tpu.memory_space<smem>>) -> (i32, i32) {
    %c0_i32 = arith.constant 0 : i32
    %c0_i32_0 = arith.constant 0 : i32
    %c0_i32_1 = arith.constant 0 : i32
    return %c0_i32, %c0_i32_0 : i32, i32
  }
  func.func @transform_6(%arg0: i32, %arg1: memref<8xi32, #tpu.memory_space<smem>>) -> (i32, i32) {
    %c0_i32 = arith.constant 0 : i32
    %c0_i32_0 = arith.constant 0 : i32
    %c0_i32_1 = arith.constant 0 : i32
    return %c0_i32, %c0_i32_0 : i32, i32
  }
  func.func @transform_7(%arg0: i32, %arg1: memref<8xi32, #tpu.memory_space<smem>>) -> (i32, i32) {
    %c0_i32 = arith.constant 0 : i32
    %c0_i32_0 = arith.constant 0 : i32
    %c0_i32_1 = arith.constant 0 : i32
    return %c0_i32, %c0_i32_0 : i32, i32
  }
  func.func @transform_8(%arg0: i32, %arg1: memref<8xi32, #tpu.memory_space<smem>>) -> (i32, i32) {
    %c0_i32 = arith.constant 0 : i32
    %c0_i32_0 = arith.constant 0 : i32
    %c0_i32_1 = arith.constant 0 : i32
    return %c0_i32, %c0_i32_0 : i32, i32
  }
  func.func @transform_9(%arg0: i32, %arg1: memref<8xi32, #tpu.memory_space<smem>>) -> (i32, i32) {
    %c0_i32 = arith.constant 0 : i32
    %c0_i32_0 = arith.constant 0 : i32
    %c0_i32_1 = arith.constant 0 : i32
    return %c0_i32, %c0_i32_0 : i32, i32
  }
}

</mosaic_0001>

<llo_original>
// kernel: tpu_custom_call.1
$region0: #{tpu_custom_call.1}
  #allocation0 [shape = 'u32[]', space=smem, size = 0x4, offset = 0x4, fixed_abs, tag = 'smem constant byte address 0x4 - core index']
  #allocation1 [shape = 'u32[72,128]{1,0:T(1,128)}', space=vmem, size = 0x9000, scoped, tag = 'internal scratch']
  #allocation2 [shape = 'f32[8,32]{1,0:T(8,128)}', space=vmem, size = 0x1000, scoped, tag = 'scratch operand']
  #allocation3 [shape = 's32[1]{0}', space=sflag, size = 0x4, scoped, tag = 'scratch operand']
  #allocation4 [shape = 's32[1]{0}', space=sflag, size = 0x4, scoped, tag = 'scoped memory for tpu_custom_call.1']
  #allocation5 [shape = 'u8[512]{0}', space=smem, size = 0x200, scoped, tag = 'prefetched SMEM operand 0']
  #allocation13 [shape = 's32[]', space=sflag, size = 0x4, offset = 0, fixed_abs, tag = 'sflag constant byte address 0x0 - dummy sync flag']
  #allocation14 [shape = 's32[]', space=sflag, size = 0x4, offset = 0, fixed_abs, tag = 'sflag constant byte address 0x0 - dummy sync flag']
  #allocation15 [shape = 's32[]', space=sflag, size = 0x4, offset = 0, fixed_abs, tag = 'sflag constant byte address 0x0 - dummy sync flag']
  #allocation16 [shape = 's32[]', space=sflag, size = 0x4, offset = 0, fixed_abs, tag = 'sflag constant byte address 0x0 - dummy sync flag']
  #allocation17 [shape = 's32[]', space=sflag, size = 0x4, offset = 0, fixed_abs, tag = 'sflag constant byte address 0x0 - dummy sync flag']
  #allocation18 [shape = 's32[]', space=sflag, size = 0x4, offset = 0, fixed_abs, tag = 'sflag constant byte address 0x0 - dummy sync flag']
  #allocation19 [shape = 's32[]', space=sflag, size = 0x4, offset = 0, fixed_abs, tag = 'sflag constant byte address 0x0 - dummy sync flag']
  #allocation20 [shape = 's32[]', space=sflag, size = 0x4, offset = 0, fixed_abs, tag = 'sflag constant byte address 0x0 - dummy sync flag']
  %s0 = inlined_call_operand.vmem [shape: s32[8], index: 0, kind: input, shape index: {}]
  %s1 = inlined_call_operand.vmem [shape: f32[8,32], index: 1, kind: input, shape index: {}]
  %s2 = inlined_call_operand.vmem [shape: f32[8,32], index: 2, kind: input, shape index: {}]
  %s3 = inlined_call_operand.hbm [shape: f32[8,16,32], index: 3, kind: input, shape index: {}]
  %s4 = inlined_call_operand.vmem [shape: f32[64,32], index: 4, kind: input, shape index: {}]
  %s5 = inlined_call_operand.vmem [shape: bf16[32,128], index: 5, kind: input, shape index: {}]
  %s6 = inlined_call_operand.vmem [shape: bf16[32,128], index: 6, kind: input, shape index: {}]
  %s7 = inlined_call_operand.vmem [shape: f32[1,128], index: 7, kind: input, shape index: {}]
  %s8 = inlined_call_operand.hbm [shape: f32[8,256], index: 8, kind: output, shape index: {0}]
  %s9 = inlined_call_operand.hbm [shape: f32[8,256], index: 9, kind: output, shape index: {1}]
  %s10 = inlined_call_operand.hbm [shape: f32[8,128], index: 10, kind: output, shape index: {2}]
  %11 = xla_tuple %s8, %s9, %s10
  %s12 = sld [smem:[#allocation0]]
  $region294: #{tpu_custom_call.1} parent=0
    _
  %s14 = ssub.s32 1, %s12
  %s15 = scalar_select 0, %s14, %s12
  %s17 = sshll.u32 %s0, 4
  %s18 = int_to_ptr.vmem [resolvable:$true] %s17
  %20 = dma.vmem_to_smem %s18, 16, [#allocation5], [#allocation4]
  %22 = dma.done [#allocation4], 16
  %23 = sfence
  $region1: #{tpu_custom_call.1} parent=0
    #allocation6 [shape = 'u8[65536]{0}', space=vmem, size = 0x10000, scoped, tag = 'input window, operand 3, single buffered']
    #allocation7 [shape = 's32[1]{0}', space=sflag, size = 0x4, scoped, tag = 'scoped memory for tpu_custom_call.1']
    #allocation8 [shape = 's32[1]{0}', space=sflag, size = 0x4, scoped, tag = 'scoped memory for tpu_custom_call.1']
    #allocation9 [shape = 'u8[8192]{0}', space=vmem, size = 0x2000, scoped, tag = 'output window, operand 0, single buffered']
    #allocation10 [shape = 'u8[8192]{0}', space=vmem, size = 0x2000, scoped, tag = 'output window, operand 1, single buffered']
    #allocation11 [shape = 's32[1]{0}', space=sflag, size = 0x4, scoped, tag = 'scoped memory for tpu_custom_call.1']
    #allocation12 [shape = 'u8[4096]{0}', space=vmem, size = 0x1000, scoped, tag = 'output window, operand 2, single buffered']
    %24 = vsyncpa [#allocation7], 0
    %25 = vsyncpa [#allocation8], 0
    %26 = vsyncpa [#allocation11], 0
    // Predicated region
    $region2: #{tpu_custom_call.1} parent=1 // pred_check
      _
    $region3: #{tpu_custom_call.1} parent=1 // pred_check_branch
      %28 = sbr.rel (0) target = $region5
    $region4: #{tpu_custom_call.1} parent=1 // pred_region
      _
    $region5: #{tpu_custom_call.1} parent=1 // pred_fallthru
      _
    // Predicated region
    $region6: #{tpu_custom_call.1} parent=1 // pred_check
      _
    $region7: #{tpu_custom_call.1} parent=1 // pred_check_branch
      %30 = sbr.rel (0) target = $region9
    $region8: #{tpu_custom_call.1} parent=1 // pred_region
      _
    $region9: #{tpu_custom_call.1} parent=1 // pred_fallthru
      _
    // Predicated region
    $region10: #{tpu_custom_call.1} parent=1 // pred_check
      _
    $region11: #{tpu_custom_call.1} parent=1 // pred_check_branch
      %32 = sbr.rel (0) target = $region13
    $region12: #{tpu_custom_call.1} parent=1 // pred_region
      %34 = vsyncadd [#allocation7], 0
      %s35 = sshll.u32 %s3, 4
      %s36 = int_to_ptr.hbm [resolvable:$true] %s35
      %s37 = sshll.u32 [#allocation6], 4
      %s38 = int_to_ptr.vmem [resolvable:$true] %s37
      %43 = dma.hbm_to_vmem [thread:$0]  %s36, 2048, %s38, [#allocation7], 128, 128, 8
    $region13: #{tpu_custom_call.1} parent=1 // pred_fallthru
      _
    // Predicated region
    $region14: #{tpu_custom_call.1} parent=1 // pred_check
      _
    $region15: #{tpu_custom_call.1} parent=1 // pred_check_branch
      %45 = sbr.rel (0) target = $region17
    $region16: #{tpu_custom_call.1} parent=1 // pred_region
      _
    $region17: #{tpu_custom_call.1} parent=1 // pred_fallthru
      _
    // Predicated region
    $region18: #{tpu_custom_call.1} parent=1 // pred_check
      _
    $region19: #{tpu_custom_call.1} parent=1 // pred_check_branch
      %47 = sbr.rel (0) target = $region21
    $region20: #{tpu_custom_call.1} parent=1 // pred_region
      _
    $region21: #{tpu_custom_call.1} parent=1 // pred_fallthru
      _
    // Predicated region
    $region22: #{tpu_custom_call.1} parent=1 // pred_check
      _
    $region23: #{tpu_custom_call.1} parent=1 // pred_check_branch
      %49 = sbr.rel (0) target = $region25
    $region24: #{tpu_custom_call.1} parent=1 // pred_region
      _
    $region25: #{tpu_custom_call.1} parent=1 // pred_fallthru
      _
    // Predicated region
    $region26: #{tpu_custom_call.1} parent=1 // pred_check
      _
    $region27: #{tpu_custom_call.1} parent=1 // pred_check_branch
      %51 = sbr.rel (0) target = $region29
    $region28: #{tpu_custom_call.1} parent=1 // pred_region
      %53 = dma.done [#allocation7], 2048
    $region29: #{tpu_custom_call.1} parent=1 // pred_fallthru
      _
    %s55 = sld [smem:[#allocation5]]
    %s56 = scalar_lea.vmem %s4, %s55
    // Predicated region
    $region30: #{tpu_custom_call.1} parent=1 // pred_check
      _
    $region31: #{tpu_custom_call.1} parent=1 // pred_check_branch
      %58 = sbr.rel target = $region33
    $region32: #{tpu_custom_call.1} parent=1 // pred_region
      // Predicated region
      $region45: #{tpu_custom_call.1} parent=32 // pred_check
        _
      $region46: #{tpu_custom_call.1} parent=32 // pred_check_branch
        %74 = sbr.rel (0) target = $region48
      $region47: #{tpu_custom_call.1} parent=32 // pred_region
        %s76 = ssub.s32 2, 1
        loop: start=0, step=1, limit=1
        $region49: #{tpu_custom_call.1} parent=47 // loop_pre_header
          _
        $region50: #{tpu_custom_call.1} parent=47 // loop_header
          %s78 = sphi 0, %s82
          %p79 = scmp.ge.s32.totalorder %s78, 1
          %s83 = sphi %s56, %s56
          %s84 = sphi [#allocation2], [#allocation2]
        $region51: #{tpu_custom_call.1} parent=47 // loop_header_branch
          %81 = sbr.rel (%p79) target = $region55
        $region52: #{tpu_custom_call.1} parent=47 // loop_body
          %v85 = vld [vmem:[%s83] sm:%s76]
          %86 = vst [vmem:[%s84] sm:%s76] %v85
        $region53: #{tpu_custom_call.1} parent=47 // loop_footer
          %s82 = sadd.s32 1, %s78
        $region54: #{tpu_custom_call.1} parent=47 // loop_footer_branch
          %77 = sbr.rel target = $region50
        $region55: #{tpu_custom_call.1} parent=47 // loop_exit
          _
      $region48: #{tpu_custom_call.1} parent=32 // pred_fallthru
        _
    $region33: #{tpu_custom_call.1} parent=1 // pred_fallthru
      _
    // Predicated region
    $region34: #{tpu_custom_call.1} parent=1 // pred_check
      _
    $region35: #{tpu_custom_call.1} parent=1 // pred_check_branch
      %60 = sbr.rel (0) target = $region37
    $region36: #{tpu_custom_call.1} parent=1 // pred_region
      %s62 = ssub.s32 2, 1
      loop: start=0, step=1, limit=1
      $region38: #{tpu_custom_call.1} parent=36 // loop_pre_header
        _
      $region39: #{tpu_custom_call.1} parent=36 // loop_header
        %s64 = sphi 0, %s68
        %p65 = scmp.ge.s32.totalorder %s64, 1
        %s69 = sphi %s56, %s56
        %s70 = sphi [#allocation2], [#allocation2]
      $region40: #{tpu_custom_call.1} parent=36 // loop_header_branch
        %67 = sbr.rel (%p65) target = $region44
      $region41: #{tpu_custom_call.1} parent=36 // loop_body
        %v71 = vld [vmem:[%s69] sm:%s62]
        %72 = vst [vmem:[%s70] sm:%s62] %v71
      $region42: #{tpu_custom_call.1} parent=36 // loop_footer
        %s68 = sadd.s32 1, %s64
      $region43: #{tpu_custom_call.1} parent=36 // loop_footer_branch
        %63 = sbr.rel target = $region39
      $region44: #{tpu_custom_call.1} parent=36 // loop_exit
        _
    $region37: #{tpu_custom_call.1} parent=1 // pred_fallthru
      _
    // Predicated region
    $region56: #{tpu_custom_call.1} parent=1 // pred_check
      _
    $region57: #{tpu_custom_call.1} parent=1 // pred_check_branch
      %89 = sbr.rel (0) target = $region59
    $region58: #{tpu_custom_call.1} parent=1 // pred_region
      %90 = vsyncadd [#allocation3], 16
    $region59: #{tpu_custom_call.1} parent=1 // pred_fallthru
      _
    %s91 = sld [smem:[#allocation5 + $0x1]]
    %s92 = scalar_lea.vmem %s4, %s91
    %s93 = scalar_lea.vmem [#allocation2], 1
    // Predicated region
    $region60: #{tpu_custom_call.1} parent=1 // pred_check
      _
    $region61: #{tpu_custom_call.1} parent=1 // pred_check_branch
      %95 = sbr.rel target = $region63
    $region62: #{tpu_custom_call.1} parent=1 // pred_region
      // Predicated region
      $region75: #{tpu_custom_call.1} parent=62 // pred_check
        _
      $region76: #{tpu_custom_call.1} parent=62 // pred_check_branch
        %111 = sbr.rel (0) target = $region78
      $region77: #{tpu_custom_call.1} parent=62 // pred_region
        %s113 = ssub.s32 2, 1
        loop: start=0, step=1, limit=1
        $region79: #{tpu_custom_call.1} parent=77 // loop_pre_header
          _
        $region80: #{tpu_custom_call.1} parent=77 // loop_header
          %s115 = sphi 0, %s119
          %p116 = scmp.ge.s32.totalorder %s115, 1
          %s120 = sphi %s92, %s92
          %s121 = sphi %s93, %s93
        $region81: #{tpu_custom_call.1} parent=77 // loop_header_branch
          %118 = sbr.rel (%p116) target = $region85
        $region82: #{tpu_custom_call.1} parent=77 // loop_body
          %v122 = vld [vmem:[%s120] sm:%s113]
          %123 = vst [vmem:[%s121] sm:%s113] %v122
        $region83: #{tpu_custom_call.1} parent=77 // loop_footer
          %s119 = sadd.s32 1, %s115
        $region84: #{tpu_custom_call.1} parent=77 // loop_footer_branch
          %114 = sbr.rel target = $region80
        $region85: #{tpu_custom_call.1} parent=77 // loop_exit
          _
      $region78: #{tpu_custom_call.1} parent=62 // pred_fallthru
        _
    $region63: #{tpu_custom_call.1} parent=1 // pred_fallthru
      _
    // Predicated region
    $region64: #{tpu_custom_call.1} parent=1 // pred_check
      _
    $region65: #{tpu_custom_call.1} parent=1 // pred_check_branch
      %97 = sbr.rel (0) target = $region67
    $region66: #{tpu_custom_call.1} parent=1 // pred_region
      %s99 = ssub.s32 2, 1
      loop: start=0, step=1, limit=1
      $region68: #{tpu_custom_call.1} parent=66 // loop_pre_header
        _
      $region69: #{tpu_custom_call.1} parent=66 // loop_header
        %s101 = sphi 0, %s105
        %p102 = scmp.ge.s32.totalorder %s101, 1
        %s106 = sphi %s92, %s92
        %s107 = sphi %s93, %s93
      $region70: #{tpu_custom_call.1} parent=66 // loop_header_branch
        %104 = sbr.rel (%p102) target = $region74
      $region71: #{tpu_custom_call.1} parent=66 // loop_body
        %v108 = vld [vmem:[%s106] sm:%s99]
        %109 = vst [vmem:[%s107] sm:%s99] %v108
      $region72: #{tpu_custom_call.1} parent=66 // loop_footer
        %s105 = sadd.s32 1, %s101
      $region73: #{tpu_custom_call.1} parent=66 // loop_footer_branch
        %100 = sbr.rel target = $region69
      $region74: #{tpu_custom_call.1} parent=66 // loop_exit
        _
    $region67: #{tpu_custom_call.1} parent=1 // pred_fallthru
      _
    // Predicated region
    $region86: #{tpu_custom_call.1} parent=1 // pred_check
      _
    $region87: #{tpu_custom_call.1} parent=1 // pred_check_branch
      %126 = sbr.rel (0) target = $region89
    $region88: #{tpu_custom_call.1} parent=1 // pred_region
      %127 = vsyncadd [#allocation3], 16
    $region89: #{tpu_custom_call.1} parent=1 // pred_fallthru
      _
    %s128 = sld [smem:[#allocation5 + $0x2]]
    %s129 = scalar_lea.vmem %s4, %s128
    %s130 = scalar_lea.vmem [#allocation2], 2
    // Predicated region
    $region90: #{tpu_custom_call.1} parent=1 // pred_check
      _
    $region91: #{tpu_custom_call.1} parent=1 // pred_check_branch
      %132 = sbr.rel target = $region93
    $region92: #{tpu_custom_call.1} parent=1 // pred_region
      // Predicated region
      $region105: #{tpu_custom_call.1} parent=92 // pred_check
        _
      $region106: #{tpu_custom_call.1} parent=92 // pred_check_branch
        %148 = sbr.rel (0) target = $region108
      $region107: #{tpu_custom_call.1} parent=92 // pred_region
        %s150 = ssub.s32 2, 1
        loop: start=0, step=1, limit=1
        $region109: #{tpu_custom_call.1} parent=107 // loop_pre_header
          _
        $region110: #{tpu_custom_call.1} parent=107 // loop_header
          %s152 = sphi 0, %s156
          %p153 = scmp.ge.s32.totalorder %s152, 1
          %s157 = sphi %s129, %s129
          %s158 = sphi %s130, %s130
        $region111: #{tpu_custom_call.1} parent=107 // loop_header_branch
          %155 = sbr.rel (%p153) target = $region115
        $region112: #{tpu_custom_call.1} parent=107 // loop_body
          %v159 = vld [vmem:[%s157] sm:%s150]
          %160 = vst [vmem:[%s158] sm:%s150] %v159
        $region113: #{tpu_custom_call.1} parent=107 // loop_footer
          %s156 = sadd.s32 1, %s152
        $region114: #{tpu_custom_call.1} parent=107 // loop_footer_branch
          %151 = sbr.rel target = $region110
        $region115: #{tpu_custom_call.1} parent=107 // loop_exit
          _
      $region108: #{tpu_custom_call.1} parent=92 // pred_fallthru
        _
    $region93: #{tpu_custom_call.1} parent=1 // pred_fallthru
      _
    // Predicated region
    $region94: #{tpu_custom_call.1} parent=1 // pred_check
      _
    $region95: #{tpu_custom_call.1} parent=1 // pred_check_branch
      %134 = sbr.rel (0) target = $region97
    $region96: #{tpu_custom_call.1} parent=1 // pred_region
      %s136 = ssub.s32 2, 1
      loop: start=0, step=1, limit=1
      $region98: #{tpu_custom_call.1} parent=96 // loop_pre_header
        _
      $region99: #{tpu_custom_call.1} parent=96 // loop_header
        %s138 = sphi 0, %s142
        %p139 = scmp.ge.s32.totalorder %s138, 1
        %s143 = sphi %s129, %s129
        %s144 = sphi %s130, %s130
      $region100: #{tpu_custom_call.1} parent=96 // loop_header_branch
        %141 = sbr.rel (%p139) target = $region104
      $region101: #{tpu_custom_call.1} parent=96 // loop_body
        %v145 = vld [vmem:[%s143] sm:%s136]
        %146 = vst [vmem:[%s144] sm:%s136] %v145
      $region102: #{tpu_custom_call.1} parent=96 // loop_footer
        %s142 = sadd.s32 1, %s138
      $region103: #{tpu_custom_call.1} parent=96 // loop_footer_branch
        %137 = sbr.rel target = $region99
      $region104: #{tpu_custom_call.1} parent=96 // loop_exit
        _
    $region97: #{tpu_custom_call.1} parent=1 // pred_fallthru
      _
    // Predicated region
    $region116: #{tpu_custom_call.1} parent=1 // pred_check
      _
    $region117: #{tpu_custom_call.1} parent=1 // pred_check_branch
      %163 = sbr.rel (0) target = $region119
    $region118: #{tpu_custom_call.1} parent=1 // pred_region
      %164 = vsyncadd [#allocation3], 16
    $region119: #{tpu_custom_call.1} parent=1 // pred_fallthru
      _
    %s165 = sld [smem:[#allocation5 + $0x3]]
    %s166 = scalar_lea.vmem %s4, %s165
    %s167 = scalar_lea.vmem [#allocation2], 3
    // Predicated region
    $region120: #{tpu_custom_call.1} parent=1 // pred_check
      _
    $region121: #{tpu_custom_call.1} parent=1 // pred_check_branch
      %169 = sbr.rel target = $region123
    $region122: #{tpu_custom_call.1} parent=1 // pred_region
      // Predicated region
      $region135: #{tpu_custom_call.1} parent=122 // pred_check
        _
      $region136: #{tpu_custom_call.1} parent=122 // pred_check_branch
        %185 = sbr.rel (0) target = $region138
      $region137: #{tpu_custom_call.1} parent=122 // pred_region
        %s187 = ssub.s32 2, 1
        loop: start=0, step=1, limit=1
        $region139: #{tpu_custom_call.1} parent=137 // loop_pre_header
          _
        $region140: #{tpu_custom_call.1} parent=137 // loop_header
          %s189 = sphi 0, %s193
          %p190 = scmp.ge.s32.totalorder %s189, 1
          %s194 = sphi %s166, %s166
          %s195 = sphi %s167, %s167
        $region141: #{tpu_custom_call.1} parent=137 // loop_header_branch
          %192 = sbr.rel (%p190) target = $region145
        $region142: #{tpu_custom_call.1} parent=137 // loop_body
          %v196 = vld [vmem:[%s194] sm:%s187]
          %197 = vst [vmem:[%s195] sm:%s187] %v196
        $region143: #{tpu_custom_call.1} parent=137 // loop_footer
          %s193 = sadd.s32 1, %s189
        $region144: #{tpu_custom_call.1} parent=137 // loop_footer_branch
          %188 = sbr.rel target = $region140
        $region145: #{tpu_custom_call.1} parent=137 // loop_exit
          _
      $region138: #{tpu_custom_call.1} parent=122 // pred_fallthru
        _
    $region123: #{tpu_custom_call.1} parent=1 // pred_fallthru
      _
    // Predicated region
    $region124: #{tpu_custom_call.1} parent=1 // pred_check
      _
    $region125: #{tpu_custom_call.1} parent=1 // pred_check_branch
      %171 = sbr.rel (0) target = $region127
    $region126: #{tpu_custom_call.1} parent=1 // pred_region
      %s173 = ssub.s32 2, 1
      loop: start=0, step=1, limit=1
      $region128: #{tpu_custom_call.1} parent=126 // loop_pre_header
        _
      $region129: #{tpu_custom_call.1} parent=126 // loop_header
        %s175 = sphi 0, %s179
        %p176 = scmp.ge.s32.totalorder %s175, 1
        %s180 = sphi %s166, %s166
        %s181 = sphi %s167, %s167
      $region130: #{tpu_custom_call.1} parent=126 // loop_header_branch
        %178 = sbr.rel (%p176) target = $region134
      $region131: #{tpu_custom_call.1} parent=126 // loop_body
        %v182 = vld [vmem:[%s180] sm:%s173]
        %183 = vst [vmem:[%s181] sm:%s173] %v182
      $region132: #{tpu_custom_call.1} parent=126 // loop_footer
        %s179 = sadd.s32 1, %s175
      $region133: #{tpu_custom_call.1} parent=126 // loop_footer_branch
        %174 = sbr.rel target = $region129
      $region134: #{tpu_custom_call.1} parent=126 // loop_exit
        _
    $region127: #{tpu_custom_call.1} parent=1 // pred_fallthru
      _
    // Predicated region
    $region146: #{tpu_custom_call.1} parent=1 // pred_check
      _
    $region147: #{tpu_custom_call.1} parent=1 // pred_check_branch
      %200 = sbr.rel (0) target = $region149
    $region148: #{tpu_custom_call.1} parent=1 // pred_region
      %201 = vsyncadd [#allocation3], 16
    $region149: #{tpu_custom_call.1} parent=1 // pred_fallthru
      _
    %s202 = sld [smem:[#allocation5 + $0x4]]
    %s203 = scalar_lea.vmem %s4, %s202
    %s204 = scalar_lea.vmem [#allocation2], 4
    // Predicated region
    $region150: #{tpu_custom_call.1} parent=1 // pred_check
      _
    $region151: #{tpu_custom_call.1} parent=1 // pred_check_branch
      %206 = sbr.rel target = $region153
    $region152: #{tpu_custom_call.1} parent=1 // pred_region
      // Predicated region
      $region165: #{tpu_custom_call.1} parent=152 // pred_check
        _
      $region166: #{tpu_custom_call.1} parent=152 // pred_check_branch
        %222 = sbr.rel (0) target = $region168
      $region167: #{tpu_custom_call.1} parent=152 // pred_region
        %s224 = ssub.s32 2, 1
        loop: start=0, step=1, limit=1
        $region169: #{tpu_custom_call.1} parent=167 // loop_pre_header
          _
        $region170: #{tpu_custom_call.1} parent=167 // loop_header
          %s226 = sphi 0, %s230
          %p227 = scmp.ge.s32.totalorder %s226, 1
          %s231 = sphi %s203, %s203
          %s232 = sphi %s204, %s204
        $region171: #{tpu_custom_call.1} parent=167 // loop_header_branch
          %229 = sbr.rel (%p227) target = $region175
        $region172: #{tpu_custom_call.1} parent=167 // loop_body
          %v233 = vld [vmem:[%s231] sm:%s224]
          %234 = vst [vmem:[%s232] sm:%s224] %v233
        $region173: #{tpu_custom_call.1} parent=167 // loop_footer
          %s230 = sadd.s32 1, %s226
        $region174: #{tpu_custom_call.1} parent=167 // loop_footer_branch
          %225 = sbr.rel target = $region170
        $region175: #{tpu_custom_call.1} parent=167 // loop_exit
          _
      $region168: #{tpu_custom_call.1} parent=152 // pred_fallthru
        _
    $region153: #{tpu_custom_call.1} parent=1 // pred_fallthru
      _
    // Predicated region
    $region154: #{tpu_custom_call.1} parent=1 // pred_check
      _
    $region155: #{tpu_custom_call.1} parent=1 // pred_check_branch
      %208 = sbr.rel (0) target = $region157
    $region156: #{tpu_custom_call.1} parent=1 // pred_region
      %s210 = ssub.s32 2, 1
      loop: start=0, step=1, limit=1
      $region158: #{tpu_custom_call.1} parent=156 // loop_pre_header
        _
      $region159: #{tpu_custom_call.1} parent=156 // loop_header
        %s212 = sphi 0, %s216
        %p213 = scmp.ge.s32.totalorder %s212, 1
        %s217 = sphi %s203, %s203
        %s218 = sphi %s204, %s204
      $region160: #{tpu_custom_call.1} parent=156 // loop_header_branch
        %215 = sbr.rel (%p213) target = $region164
      $region161: #{tpu_custom_call.1} parent=156 // loop_body
        %v219 = vld [vmem:[%s217] sm:%s210]
        %220 = vst [vmem:[%s218] sm:%s210] %v219
      $region162: #{tpu_custom_call.1} parent=156 // loop_footer
        %s216 = sadd.s32 1, %s212
      $region163: #{tpu_custom_call.1} parent=156 // loop_footer_branch
        %211 = sbr.rel target = $region159
      $region164: #{tpu_custom_call.1} parent=156 // loop_exit
        _
    $region157: #{tpu_custom_call.1} parent=1 // pred_fallthru
      _
    // Predicated region
    $region176: #{tpu_custom_call.1} parent=1 // pred_check
      _
    $region177: #{tpu_custom_call.1} parent=1 // pred_check_branch
      %237 = sbr.rel (0) target = $region179
    $region178: #{tpu_custom_call.1} parent=1 // pred_region
      %238 = vsyncadd [#allocation3], 16
    $region179: #{tpu_custom_call.1} parent=1 // pred_fallthru
      _
    %s239 = sld [smem:[#allocation5 + $0x5]]
    %s240 = scalar_lea.vmem %s4, %s239
    %s241 = scalar_lea.vmem [#allocation2], 5
    // Predicated region
    $region180: #{tpu_custom_call.1} parent=1 // pred_check
      _
    $region181: #{tpu_custom_call.1} parent=1 // pred_check_branch
      %243 = sbr.rel target = $region183
    $region182: #{tpu_custom_call.1} parent=1 // pred_region
      // Predicated region
      $region195: #{tpu_custom_call.1} parent=182 // pred_check
        _
      $region196: #{tpu_custom_call.1} parent=182 // pred_check_branch
        %259 = sbr.rel (0) target = $region198
      $region197: #{tpu_custom_call.1} parent=182 // pred_region
        %s261 = ssub.s32 2, 1
        loop: start=0, step=1, limit=1
        $region199: #{tpu_custom_call.1} parent=197 // loop_pre_header
          _
        $region200: #{tpu_custom_call.1} parent=197 // loop_header
          %s263 = sphi 0, %s267
          %p264 = scmp.ge.s32.totalorder %s263, 1
          %s268 = sphi %s240, %s240
          %s269 = sphi %s241, %s241
        $region201: #{tpu_custom_call.1} parent=197 // loop_header_branch
          %266 = sbr.rel (%p264) target = $region205
        $region202: #{tpu_custom_call.1} parent=197 // loop_body
          %v270 = vld [vmem:[%s268] sm:%s261]
          %271 = vst [vmem:[%s269] sm:%s261] %v270
        $region203: #{tpu_custom_call.1} parent=197 // loop_footer
          %s267 = sadd.s32 1, %s263
        $region204: #{tpu_custom_call.1} parent=197 // loop_footer_branch
          %262 = sbr.rel target = $region200
        $region205: #{tpu_custom_call.1} parent=197 // loop_exit
          _
      $region198: #{tpu_custom_call.1} parent=182 // pred_fallthru
        _
    $region183: #{tpu_custom_call.1} parent=1 // pred_fallthru
      _
    // Predicated region
    $region184: #{tpu_custom_call.1} parent=1 // pred_check
      _
    $region185: #{tpu_custom_call.1} parent=1 // pred_check_branch
      %245 = sbr.rel (0) target = $region187
    $region186: #{tpu_custom_call.1} parent=1 // pred_region
      %s247 = ssub.s32 2, 1
      loop: start=0, step=1, limit=1
      $region188: #{tpu_custom_call.1} parent=186 // loop_pre_header
        _
      $region189: #{tpu_custom_call.1} parent=186 // loop_header
        %s249 = sphi 0, %s253
        %p250 = scmp.ge.s32.totalorder %s249, 1
        %s254 = sphi %s240, %s240
        %s255 = sphi %s241, %s241
      $region190: #{tpu_custom_call.1} parent=186 // loop_header_branch
        %252 = sbr.rel (%p250) target = $region194
      $region191: #{tpu_custom_call.1} parent=186 // loop_body
        %v256 = vld [vmem:[%s254] sm:%s247]
        %257 = vst [vmem:[%s255] sm:%s247] %v256
      $region192: #{tpu_custom_call.1} parent=186 // loop_footer
        %s253 = sadd.s32 1, %s249
      $region193: #{tpu_custom_call.1} parent=186 // loop_footer_branch
        %248 = sbr.rel target = $region189
      $region194: #{tpu_custom_call.1} parent=186 // loop_exit
        _
    $region187: #{tpu_custom_call.1} parent=1 // pred_fallthru
      _
    // Predicated region
    $region206: #{tpu_custom_call.1} parent=1 // pred_check
      _
    $region207: #{tpu_custom_call.1} parent=1 // pred_check_branch
      %274 = sbr.rel (0) target = $region209
    $region208: #{tpu_custom_call.1} parent=1 // pred_region
      %275 = vsyncadd [#allocation3], 16
    $region209: #{tpu_custom_call.1} parent=1 // pred_fallthru
      _
    %s276 = sld [smem:[#allocation5 + $0x6]]
    %s277 = scalar_lea.vmem %s4, %s276
    %s278 = scalar_lea.vmem [#allocation2], 6
    // Predicated region
    $region210: #{tpu_custom_call.1} parent=1 // pred_check
      _
    $region211: #{tpu_custom_call.1} parent=1 // pred_check_branch
      %280 = sbr.rel target = $region213
    $region212: #{tpu_custom_call.1} parent=1 // pred_region
      // Predicated region
      $region225: #{tpu_custom_call.1} parent=212 // pred_check
        _
      $region226: #{tpu_custom_call.1} parent=212 // pred_check_branch
        %296 = sbr.rel (0) target = $region228
      $region227: #{tpu_custom_call.1} parent=212 // pred_region
        %s298 = ssub.s32 2, 1
        loop: start=0, step=1, limit=1
        $region229: #{tpu_custom_call.1} parent=227 // loop_pre_header
          _
        $region230: #{tpu_custom_call.1} parent=227 // loop_header
          %s300 = sphi 0, %s304
          %p301 = scmp.ge.s32.totalorder %s300, 1
          %s305 = sphi %s277, %s277
          %s306 = sphi %s278, %s278
        $region231: #{tpu_custom_call.1} parent=227 // loop_header_branch
          %303 = sbr.rel (%p301) target = $region235
        $region232: #{tpu_custom_call.1} parent=227 // loop_body
          %v307 = vld [vmem:[%s305] sm:%s298]
          %308 = vst [vmem:[%s306] sm:%s298] %v307
        $region233: #{tpu_custom_call.1} parent=227 // loop_footer
          %s304 = sadd.s32 1, %s300
        $region234: #{tpu_custom_call.1} parent=227 // loop_footer_branch
          %299 = sbr.rel target = $region230
        $region235: #{tpu_custom_call.1} parent=227 // loop_exit
          _
      $region228: #{tpu_custom_call.1} parent=212 // pred_fallthru
        _
    $region213: #{tpu_custom_call.1} parent=1 // pred_fallthru
      _
    // Predicated region
    $region214: #{tpu_custom_call.1} parent=1 // pred_check
      _
    $region215: #{tpu_custom_call.1} parent=1 // pred_check_branch
      %282 = sbr.rel (0) target = $region217
    $region216: #{tpu_custom_call.1} parent=1 // pred_region
      %s284 = ssub.s32 2, 1
      loop: start=0, step=1, limit=1
      $region218: #{tpu_custom_call.1} parent=216 // loop_pre_header
        _
      $region219: #{tpu_custom_call.1} parent=216 // loop_header
        %s286 = sphi 0, %s290
        %p287 = scmp.ge.s32.totalorder %s286, 1
        %s291 = sphi %s277, %s277
        %s292 = sphi %s278, %s278
      $region220: #{tpu_custom_call.1} parent=216 // loop_header_branch
        %289 = sbr.rel (%p287) target = $region224
      $region221: #{tpu_custom_call.1} parent=216 // loop_body
        %v293 = vld [vmem:[%s291] sm:%s284]
        %294 = vst [vmem:[%s292] sm:%s284] %v293
      $region222: #{tpu_custom_call.1} parent=216 // loop_footer
        %s290 = sadd.s32 1, %s286
      $region223: #{tpu_custom_call.1} parent=216 // loop_footer_branch
        %285 = sbr.rel target = $region219
      $region224: #{tpu_custom_call.1} parent=216 // loop_exit
        _
    $region217: #{tpu_custom_call.1} parent=1 // pred_fallthru
      _
    // Predicated region
    $region236: #{tpu_custom_call.1} parent=1 // pred_check
      _
    $region237: #{tpu_custom_call.1} parent=1 // pred_check_branch
      %311 = sbr.rel (0) target = $region239
    $region238: #{tpu_custom_call.1} parent=1 // pred_region
      %312 = vsyncadd [#allocation3], 16
    $region239: #{tpu_custom_call.1} parent=1 // pred_fallthru
      _
    %s313 = sld [smem:[#allocation5 + $0x7]]
    %s314 = scalar_lea.vmem %s4, %s313
    %s315 = scalar_lea.vmem [#allocation2], 7
    // Predicated region
    $region240: #{tpu_custom_call.1} parent=1 // pred_check
      _
    $region241: #{tpu_custom_call.1} parent=1 // pred_check_branch
      %317 = sbr.rel target = $region243
    $region242: #{tpu_custom_call.1} parent=1 // pred_region
      // Predicated region
      $region255: #{tpu_custom_call.1} parent=242 // pred_check
        _
      $region256: #{tpu_custom_call.1} parent=242 // pred_check_branch
        %333 = sbr.rel (0) target = $region258
      $region257: #{tpu_custom_call.1} parent=242 // pred_region
        %s335 = ssub.s32 2, 1
        loop: start=0, step=1, limit=1
        $region259: #{tpu_custom_call.1} parent=257 // loop_pre_header
          _
        $region260: #{tpu_custom_call.1} parent=257 // loop_header
          %s337 = sphi 0, %s341
          %p338 = scmp.ge.s32.totalorder %s337, 1
          %s342 = sphi %s314, %s314
          %s343 = sphi %s315, %s315
        $region261: #{tpu_custom_call.1} parent=257 // loop_header_branch
          %340 = sbr.rel (%p338) target = $region265
        $region262: #{tpu_custom_call.1} parent=257 // loop_body
          %v344 = vld [vmem:[%s342] sm:%s335]
          %345 = vst [vmem:[%s343] sm:%s335] %v344
        $region263: #{tpu_custom_call.1} parent=257 // loop_footer
          %s341 = sadd.s32 1, %s337
        $region264: #{tpu_custom_call.1} parent=257 // loop_footer_branch
          %336 = sbr.rel target = $region260
        $region265: #{tpu_custom_call.1} parent=257 // loop_exit
          _
      $region258: #{tpu_custom_call.1} parent=242 // pred_fallthru
        _
    $region243: #{tpu_custom_call.1} parent=1 // pred_fallthru
      _
    // Predicated region
    $region244: #{tpu_custom_call.1} parent=1 // pred_check
      _
    $region245: #{tpu_custom_call.1} parent=1 // pred_check_branch
      %319 = sbr.rel (0) target = $region247
    $region246: #{tpu_custom_call.1} parent=1 // pred_region
      %s321 = ssub.s32 2, 1
      loop: start=0, step=1, limit=1
      $region248: #{tpu_custom_call.1} parent=246 // loop_pre_header
        _
      $region249: #{tpu_custom_call.1} parent=246 // loop_header
        %s323 = sphi 0, %s327
        %p324 = scmp.ge.s32.totalorder %s323, 1
        %s328 = sphi %s314, %s314
        %s329 = sphi %s315, %s315
      $region250: #{tpu_custom_call.1} parent=246 // loop_header_branch
        %326 = sbr.rel (%p324) target = $region254
      $region251: #{tpu_custom_call.1} parent=246 // loop_body
        %v330 = vld [vmem:[%s328] sm:%s321]
        %331 = vst [vmem:[%s329] sm:%s321] %v330
      $region252: #{tpu_custom_call.1} parent=246 // loop_footer
        %s327 = sadd.s32 1, %s323
      $region253: #{tpu_custom_call.1} parent=246 // loop_footer_branch
        %322 = sbr.rel target = $region249
      $region254: #{tpu_custom_call.1} parent=246 // loop_exit
        _
    $region247: #{tpu_custom_call.1} parent=1 // pred_fallthru
      _
    // Predicated region
    $region266: #{tpu_custom_call.1} parent=1 // pred_check
      _
    $region267: #{tpu_custom_call.1} parent=1 // pred_check_branch
      %348 = sbr.rel (0) target = $region269
    $region268: #{tpu_custom_call.1} parent=1 // pred_region
      %349 = vsyncadd [#allocation3], 16
    $region269: #{tpu_custom_call.1} parent=1 // pred_fallthru
      _
    %350 = vst [vmem:[#allocation9] sm:$0xff] 0.0
    %351 = vst [vmem:[#allocation9 + $0x8] sm:$0xff] 0.0
    %352 = vst [vmem:[#allocation10] sm:$0xff] 0.0
    %353 = vst [vmem:[#allocation10 + $0x8] sm:$0xff] 0.0
    %354 = vst [vmem:[#allocation12] sm:$0xff] 0.0
    %v355 = vld [vmem:[%s1] sm:$0xff]
    %v356 = vld [vmem:[%s2] sm:$0xff]
    %v357 = vpack.c.bf16 %v355, %v355
    %v358 = vld [vmem:[%s6] sm:$0xf]
    %v359 = vld [vmem:[%s6 + $0x4] sm:$0xf]
    %v360 = vld [vmem:[%s6 + $0x8] sm:$0xf]
    %v361 = vld [vmem:[%s6 + $0xc] sm:$0xf]
    %v362 = vld [vmem:[%s7] sm:$0x1]
    %v364 = vperm.slane %v362, 0
    %v370 = vunpack.c.l.b16 %v358
    %v371 = vunpack.c.l.b16 %v359
    %v372 = vunpack.c.l.b16 %v360
    %v373 = vunpack.c.l.b16 %v361
    %v374 = vpack.c.b16 %v371, %v370
    %v375 = vpack.c.b16 %v373, %v372
    %vm378 = vcmask 261120
    %v380 = vsel %vm378, %v357, 0
    %382 = vmatpush.bf16.msra.mxu0 0
    %383 = vmatpush.bf16.msra.mxu0 0
    %384 = vmatpush.bf16.msra.mxu0 0
    %385 = vmatpush.bf16.msra.mxu0 0
    %386 = vmatpush.bf16.msra.mxu0 0
    %387 = vmatpush.bf16.msra.mxu0 0
    %388 = vmatpush.bf16.msra.mxu0 %v375
    %389 = vmatpush.bf16.msra.mxu0 %v374
    %390 = vmatmul.bf16.gmra.mxu0 %v380
    %v391 = vpop.f32.mrf.mxu0
    %v392 = vadd.f32 %v364, %v391
    %v393 = vpop.f32.mrf.mxu0
    %394 = vdwg.mxu0
    %s395 = smul.u32 1, 1
    %s396 = sshll.u32 %s395, 4
    %397 = dma.done [#allocation3], %s396
    %s398 = sshll.u32 %s395, 4
    %399 = dma.done [#allocation3], %s398
    %s400 = sshll.u32 %s395, 4
    %401 = dma.done [#allocation3], %s400
    %s402 = sshll.u32 %s395, 4
    %403 = dma.done [#allocation3], %s402
    %s404 = sshll.u32 %s395, 4
    %405 = dma.done [#allocation3], %s404
    %s406 = sshll.u32 %s395, 4
    %407 = dma.done [#allocation3], %s406
    %s408 = sshll.u32 %s395, 4
    %409 = dma.done [#allocation3], %s408
    %s410 = sshll.u32 %s395, 4
    %411 = dma.done [#allocation3], %s410
    %v412 = vld [vmem:[#allocation2] sm:$0xff]
    %v413 = vpack.c.bf16 %v412, %v412
    %v414 = vld [vmem:[%s5] sm:$0xf]
    %v415 = vld [vmem:[%s5 + $0x4] sm:$0xf]
    %v416 = vld [vmem:[%s5 + $0x8] sm:$0xf]
    %v417 = vld [vmem:[%s5 + $0xc] sm:$0xf]
    %v422 = vunpack.c.l.b16 %v414
    %v423 = vunpack.c.l.b16 %v415
    %v424 = vunpack.c.l.b16 %v416
    %v425 = vunpack.c.l.b16 %v417
    %v426 = vpack.c.b16 %v423, %v422
    %v427 = vpack.c.b16 %v425, %v424
    %v431 = vsel %vm378, %v413, 0
    %433 = vmatpush.bf16.msra.mxu0 0
    %434 = vmatpush.bf16.msra.mxu0 0
    %435 = vmatpush.bf16.msra.mxu0 0
    %436 = vmatpush.bf16.msra.mxu0 0
    %437 = vmatpush.bf16.msra.mxu0 0
    %438 = vmatpush.bf16.msra.mxu0 0
    %439 = vmatpush.bf16.msra.mxu0 %v427
    %440 = vmatpush.bf16.msra.mxu0 %v426
    %441 = vmatmul.bf16.gmra.mxu0 %v431
    %v442 = vpop.f32.mrf.mxu0
    %v443 = vadd.f32 0.0, %v442
    %v444 = vpop.f32.mrf.mxu0
    %445 = vdwg.mxu0
    %v446 = vadd.f32 %v392, %v443
    %v447 = vxor.u32 %v446, 2147483648
    %v448 = vmul.f32 %v447, 1.442695
    %v449 = vpow.pop %v448
    %v450 = vadd.f32 %v449, 1.0
    %v451 = vrcp.pop %v450
    %v452 = vmul.f32 %v450, %v451
    %v453 = vsub.f32 1.0, %v452
    %v454 = vmul.f32 %v451, %v453
    %v455 = vadd.f32 %v451, %v454
    %vm456 = vweird.f32 %v450
    %vm457 = vweird.f32 %v451
    %vm458 = vmor %vm456, %vm457
    %v459 = vsel %vm458, %v451, %v455
    %v460 = vand.u32 2147483647, %v450
    %vm461 = vcmp.eq.f32.partialorder %v460, 8.507059e+37
    %v462 = vand.u32 %v450, 2147483648
    %v463 = vor.u32 1.1754944e-38, %v462
    %v464 = vsel %vm461, %v463, %v459
    %v465 = vmul.f32 1.0, %v464
    %v466 = vtanh.pop %v446
    %468 = vrot.lane.b32.xlu0 %v356, 32
    %v469 = vpop.permute.xlu0 %468
    %v471 = vmul.f32 %v465, %v469
    %473 = vrot.lane.b32.xlu0 %v466, 64
    %v474 = vpop.permute.xlu0 %473
    %v476 = vmul.f32 %v465, %v474
    %478 = vrot.lane.b32.xlu0 %v476, 32
    %v479 = vpop.permute.xlu0 %478
    %v481 = vadd.f32 %v471, %v479
    %v482 = vtanh.pop %v481
    %484 = vrot.lane.b32.xlu0 %v482, 64
    %v485 = vpop.permute.xlu0 %484
    %v487 = vmul.f32 %v465, %v485
    %v488 = vld [vmem:[#allocation6] sm:$0xff]
    %v489 = vld [vmem:[#allocation6 + $0x8] sm:$0xff]
    %v490 = vld [vmem:[#allocation6 + $0x10] sm:$0xff]
    %v491 = vld [vmem:[#allocation6 + $0x18] sm:$0xff]
    %v492 = vld [vmem:[#allocation6 + $0x20] sm:$0xff]
    %v493 = vld [vmem:[#allocation6 + $0x28] sm:$0xff]
    %v494 = vld [vmem:[#allocation6 + $0x30] sm:$0xff]
    %v495 = vld [vmem:[#allocation6 + $0x38] sm:$0xff]
    %v496 = vld [vmem:[#allocation6 + $0x40] sm:$0xff]
    %v497 = vld [vmem:[#allocation6 + $0x48] sm:$0xff]
    %v498 = vld [vmem:[#allocation6 + $0x50] sm:$0xff]
    %v499 = vld [vmem:[#allocation6 + $0x58] sm:$0xff]
    %v500 = vld [vmem:[#allocation6 + $0x60] sm:$0xff]
    %v501 = vld [vmem:[#allocation6 + $0x68] sm:$0xff]
    %v502 = vld [vmem:[#allocation6 + $0x70] sm:$0xff]
    %v503 = vld [vmem:[#allocation6 + $0x78] sm:$0xff]
    %v505 = vrot.slane %v487, 1
    %v506 = vrot.slane %v487, 2
    %v507 = vrot.slane %v487, 3
    %v508 = vrot.slane %v487, 4
    %v509 = vrot.slane %v487, 5
    %v510 = vrot.slane %v487, 6
    %v511 = vrot.slane %v487, 7
    %v512 = vperm.slane %v487, 0
    %v513 = vperm.slane %v505, 0
    %v514 = vperm.slane %v506, 0
    %v515 = vperm.slane %v507, 0
    %v516 = vperm.slane %v508, 0
    %v517 = vperm.slane %v509, 0
    %v518 = vperm.slane %v510, 0
    %v519 = vperm.slane %v511, 0
    %520 = vrot.lane.b32.xlu0 %v512, 32
    %v521 = vpop.permute.xlu0 %520
    %522 = vrot.lane.b32.xlu0 %v513, 32
    %v523 = vpop.permute.xlu0 %522
    %524 = vrot.lane.b32.xlu0 %v514, 32
    %v525 = vpop.permute.xlu0 %524
    %526 = vrot.lane.b32.xlu0 %v515, 32
    %v527 = vpop.permute.xlu0 %526
    %528 = vrot.lane.b32.xlu0 %v516, 32
    %v529 = vpop.permute.xlu0 %528
    %530 = vrot.lane.b32.xlu0 %v517, 32
    %v531 = vpop.permute.xlu0 %530
    %532 = vrot.lane.b32.xlu0 %v518, 32
    %v533 = vpop.permute.xlu0 %532
    %534 = vrot.lane.b32.xlu0 %v519, 32
    %v535 = vpop.permute.xlu0 %534
    %v544 = vmul.f32 %v488, %v521
    %v545 = vmul.f32 %v489, %v521
    %v546 = vmul.f32 %v490, %v523
    %v547 = vmul.f32 %v491, %v523
    %v548 = vmul.f32 %v492, %v525
    %v549 = vmul.f32 %v493, %v525
    %v550 = vmul.f32 %v494, %v527
    %v551 = vmul.f32 %v495, %v527
    %v552 = vmul.f32 %v496, %v529
    %v553 = vmul.f32 %v497, %v529
    %v554 = vmul.f32 %v498, %v531
    %v555 = vmul.f32 %v499, %v531
    %v556 = vmul.f32 %v500, %v533
    %v557 = vmul.f32 %v501, %v533
    %v558 = vmul.f32 %v502, %v535
    %v559 = vmul.f32 %v503, %v535
    %v560 = vsel %vm378, %v544, 0.0
    %561 = vadd.xlane.f32.xlu0 %v560
    %v562 = vpop.xlane.xlu0 %561
    %v563 = vsel %vm378, %v545, 0.0
    %564 = vadd.xlane.f32.xlu0 %v563
    %v565 = vpop.xlane.xlu0 %564
    %v566 = vsel %vm378, %v546, 0.0
    %567 = vadd.xlane.f32.xlu0 %v566
    %v568 = vpop.xlane.xlu0 %567
    %v569 = vsel %vm378, %v547, 0.0
    %570 = vadd.xlane.f32.xlu0 %v569
    %v571 = vpop.xlane.xlu0 %570
    %v572 = vsel %vm378, %v548, 0.0
    %573 = vadd.xlane.f32.xlu0 %v572
    %v574 = vpop.xlane.xlu0 %573
    %v575 = vsel %vm378, %v549, 0.0
    %576 = vadd.xlane.f32.xlu0 %v575
    %v577 = vpop.xlane.xlu0 %576
    %v578 = vsel %vm378, %v550, 0.0
    %579 = vadd.xlane.f32.xlu0 %v578
    %v580 = vpop.xlane.xlu0 %579
    %v581 = vsel %vm378, %v551, 0.0
    %582 = vadd.xlane.f32.xlu0 %v581
    %v583 = vpop.xlane.xlu0 %582
    %v584 = vsel %vm378, %v552, 0.0
    %585 = vadd.xlane.f32.xlu0 %v584
    %v586 = vpop.xlane.xlu0 %585
    %v587 = vsel %vm378, %v553, 0.0
    %588 = vadd.xlane.f32.xlu0 %v587
    %v589 = vpop.xlane.xlu0 %588
    %v590 = vsel %vm378, %v554, 0.0
    %591 = vadd.xlane.f32.xlu0 %v590
    %v592 = vpop.xlane.xlu0 %591
    %v593 = vsel %vm378, %v555, 0.0
    %594 = vadd.xlane.f32.xlu0 %v593
    %v595 = vpop.xlane.xlu0 %594
    %v596 = vsel %vm378, %v556, 0.0
    %597 = vadd.xlane.f32.xlu0 %v596
    %v598 = vpop.xlane.xlu0 %597
    %v599 = vsel %vm378, %v557, 0.0
    %600 = vadd.xlane.f32.xlu0 %v599
    %v601 = vpop.xlane.xlu0 %600
    %v602 = vsel %vm378, %v558, 0.0
    %603 = vadd.xlane.f32.xlu0 %v602
    %v604 = vpop.xlane.xlu0 %603
    %v605 = vsel %vm378, %v559, 0.0
    %606 = vadd.xlane.f32.xlu0 %v605
    %v607 = vpop.xlane.xlu0 %606
    %v624 = vlaneseq
    %v625 = vand.u32 %v624, 127
    %v626 = vperm.slane %v562, %v625
    %v627 = vadd.s32 %v625, 4294967288
    %v628 = vperm.slane %v565, %v627
    %vm629 = vcmask 130112
    %v630 = vsel %vm629, %v628, %v626
    %v631 = vperm.slane %v568, %v625
    %v632 = vperm.slane %v571, %v627
    %v633 = vsel %vm629, %v632, %v631
    %v634 = vperm.slane %v574, %v625
    %v635 = vperm.slane %v577, %v627
    %v636 = vsel %vm629, %v635, %v634
    %v637 = vperm.slane %v580, %v625
    %v638 = vperm.slane %v583, %v627
    %v639 = vsel %vm629, %v638, %v637
    %v640 = vperm.slane %v586, %v625
    %v641 = vperm.slane %v589, %v627
    %v642 = vsel %vm629, %v641, %v640
    %v643 = vperm.slane %v592, %v625
    %v644 = vperm.slane %v595, %v627
    %v645 = vsel %vm629, %v644, %v643
    %v646 = vperm.slane %v598, %v625
    %v647 = vperm.slane %v601, %v627
    %v648 = vsel %vm629, %v647, %v646
    %v649 = vperm.slane %v604, %v625
    %v650 = vperm.slane %v607, %v627
    %v651 = vsel %vm629, %v650, %v649
    %vm652 = vcmask 1041409
    %v653 = vsel %vm652, %v633, %v630
    %vm654 = vcmask 1042434
    %v655 = vsel %vm654, %v636, %v653
    %vm656 = vcmask 1043459
    %v657 = vsel %vm656, %v639, %v655
    %vm658 = vcmask 1044484
    %v659 = vsel %vm658, %v642, %v657
    %vm660 = vcmask 1045509
    %v661 = vsel %vm660, %v645, %v659
    %vm662 = vcmask 1046534
    %v663 = vsel %vm662, %v648, %v661
    %vm664 = vcmask 1047559
    %v665 = vsel %vm664, %v651, %v663
    %vm667 = vcmask 130048
    %v668 = vsel %vm667, %v665, -inf
    %669 = vmax.xlane.f32.xlu0 %v668
    %v670 = vpop.xlane.xlu0 %669
    %v672 = vperm.slane %v670, 0
    %v673 = vperm.slane %v670, 1
    %v674 = vperm.slane %v670, 2
    %v675 = vperm.slane %v670, 3
    %v676 = vperm.slane %v670, 4
    %v677 = vperm.slane %v670, 5
    %v678 = vperm.slane %v670, 6
    %v679 = vperm.slane %v670, 7
    %v688 = vsub.f32 %v562, %v672
    %v689 = vsub.f32 %v565, %v672
    %v690 = vsub.f32 %v568, %v673
    %v691 = vsub.f32 %v571, %v673
    %v692 = vsub.f32 %v574, %v674
    %v693 = vsub.f32 %v577, %v674
    %v694 = vsub.f32 %v580, %v675
    %v695 = vsub.f32 %v583, %v675
    %v696 = vsub.f32 %v586, %v676
    %v697 = vsub.f32 %v589, %v676
    %v698 = vsub.f32 %v592, %v677
    %v699 = vsub.f32 %v595, %v677
    %v700 = vsub.f32 %v598, %v678
    %v701 = vsub.f32 %v601, %v678
    %v702 = vsub.f32 %v604, %v679
    %v703 = vsub.f32 %v607, %v679
    %v704 = vmul.f32 %v688, 1.442695
    %v705 = vpow.pop %v704
    %v706 = vmul.f32 %v689, 1.442695
    %v707 = vpow.pop %v706
    %v708 = vmul.f32 %v690, 1.442695
    %v709 = vpow.pop %v708
    %v710 = vmul.f32 %v691, 1.442695
    %v711 = vpow.pop %v710
    %v712 = vmul.f32 %v692, 1.442695
    %v713 = vpow.pop %v712
    %v714 = vmul.f32 %v693, 1.442695
    %v715 = vpow.pop %v714
    %v716 = vmul.f32 %v694, 1.442695
    %v717 = vpow.pop %v716
    %v718 = vmul.f32 %v695, 1.442695
    %v719 = vpow.pop %v718
    %v720 = vmul.f32 %v696, 1.442695
    %v721 = vpow.pop %v720
    %v722 = vmul.f32 %v697, 1.442695
    %v723 = vpow.pop %v722
    %v724 = vmul.f32 %v698, 1.442695
    %v725 = vpow.pop %v724
    %v726 = vmul.f32 %v699, 1.442695
    %v727 = vpow.pop %v726
    %v728 = vmul.f32 %v700, 1.442695
    %v729 = vpow.pop %v728
    %v730 = vmul.f32 %v701, 1.442695
    %v731 = vpow.pop %v730
    %v732 = vmul.f32 %v702, 1.442695
    %v733 = vpow.pop %v732
    %v734 = vmul.f32 %v703, 1.442695
    %v735 = vpow.pop %v734
    %752 = vset.pattern.permute.xlu0 0
    %753 = vperm.xlu0 %752, %v705
    %v754 = vpop.permute.xlu0 %753
    %755 = vset.pattern.permute.xlu0 0
    %756 = vperm.xlu0 %755, %v707
    %v757 = vpop.permute.xlu0 %756
    %758 = vset.pattern.permute.xlu0 0
    %759 = vperm.xlu0 %758, %v709
    %v760 = vpop.permute.xlu0 %759
    %761 = vset.pattern.permute.xlu0 0
    %762 = vperm.xlu0 %761, %v711
    %v763 = vpop.permute.xlu0 %762
    %764 = vset.pattern.permute.xlu0 0
    %765 = vperm.xlu0 %764, %v713
    %v766 = vpop.permute.xlu0 %765
    %767 = vset.pattern.permute.xlu0 0
    %768 = vperm.xlu0 %767, %v715
    %v769 = vpop.permute.xlu0 %768
    %770 = vset.pattern.permute.xlu0 0
    %771 = vperm.xlu0 %770, %v717
    %v772 = vpop.permute.xlu0 %771
    %773 = vset.pattern.permute.xlu0 0
    %774 = vperm.xlu0 %773, %v719
    %v775 = vpop.permute.xlu0 %774
    %776 = vset.pattern.permute.xlu0 0
    %777 = vperm.xlu0 %776, %v721
    %v778 = vpop.permute.xlu0 %777
    %779 = vset.pattern.permute.xlu0 0
    %780 = vperm.xlu0 %779, %v723
    %v781 = vpop.permute.xlu0 %780
    %782 = vset.pattern.permute.xlu0 0
    %783 = vperm.xlu0 %782, %v725
    %v784 = vpop.permute.xlu0 %783
    %785 = vset.pattern.permute.xlu0 0
    %786 = vperm.xlu0 %785, %v727
    %v787 = vpop.permute.xlu0 %786
    %788 = vset.pattern.permute.xlu0 0
    %789 = vperm.xlu0 %788, %v729
    %v790 = vpop.permute.xlu0 %789
    %791 = vset.pattern.permute.xlu0 0
    %792 = vperm.xlu0 %791, %v731
    %v793 = vpop.permute.xlu0 %792
    %794 = vset.pattern.permute.xlu0 0
    %795 = vperm.xlu0 %794, %v733
    %v796 = vpop.permute.xlu0 %795
    %797 = vset.pattern.permute.xlu0 0
    %798 = vperm.xlu0 %797, %v735
    %v799 = vpop.permute.xlu0 %798
    %v800 = vperm.slane %v754, %v625
    %v801 = vperm.slane %v757, %v627
    %v802 = vsel %vm629, %v801, %v800
    %v803 = vperm.slane %v760, %v625
    %v804 = vperm.slane %v763, %v627
    %v805 = vsel %vm629, %v804, %v803
    %v806 = vperm.slane %v766, %v625
    %v807 = vperm.slane %v769, %v627
    %v808 = vsel %vm629, %v807, %v806
    %v809 = vperm.slane %v772, %v625
    %v810 = vperm.slane %v775, %v627
    %v811 = vsel %vm629, %v810, %v809
    %v812 = vperm.slane %v778, %v625
    %v813 = vperm.slane %v781, %v627
    %v814 = vsel %vm629, %v813, %v812
    %v815 = vperm.slane %v784, %v625
    %v816 = vperm.slane %v787, %v627
    %v817 = vsel %vm629, %v816, %v815
    %v818 = vperm.slane %v790, %v625
    %v819 = vperm.slane %v793, %v627
    %v820 = vsel %vm629, %v819, %v818
    %v821 = vperm.slane %v796, %v625
    %v822 = vperm.slane %v799, %v627
    %v823 = vsel %vm629, %v822, %v821
    %v824 = vsel %vm652, %v805, %v802
    %v825 = vsel %vm654, %v808, %v824
    %v826 = vsel %vm656, %v811, %v825
    %v827 = vsel %vm658, %v814, %v826
    %v828 = vsel %vm660, %v817, %v827
    %v829 = vsel %vm662, %v820, %v828
    %v830 = vsel %vm664, %v823, %v829
    %v832 = vsel %vm667, %v830, 0.0
    %833 = vadd.xlane.f32.xlu0 %v832
    %v834 = vpop.xlane.xlu0 %833
    %v835 = vrcp.pop %v834
    %v837 = vperm.slane %v835, 0
    %v838 = vperm.slane %v835, 1
    %v839 = vperm.slane %v835, 2
    %v840 = vperm.slane %v835, 3
    %v841 = vperm.slane %v835, 4
    %v842 = vperm.slane %v835, 5
    %v843 = vperm.slane %v835, 6
    %v844 = vperm.slane %v835, 7
    %v853 = vmul.f32 %v705, %v837
    %v854 = vmul.f32 %v707, %v837
    %v855 = vmul.f32 %v709, %v838
    %v856 = vmul.f32 %v711, %v838
    %v857 = vmul.f32 %v713, %v839
    %v858 = vmul.f32 %v715, %v839
    %v859 = vmul.f32 %v717, %v840
    %v860 = vmul.f32 %v719, %v840
    %v861 = vmul.f32 %v721, %v841
    %v862 = vmul.f32 %v723, %v841
    %v863 = vmul.f32 %v725, %v842
    %v864 = vmul.f32 %v727, %v842
    %v865 = vmul.f32 %v729, %v843
    %v866 = vmul.f32 %v731, %v843
    %v867 = vmul.f32 %v733, %v844
    %v868 = vmul.f32 %v735, %v844
    %870 = vset.pattern.permute.xlu0 0
    %871 = vperm.xlu0 %870, %v853
    %v872 = vpop.permute.xlu0 %871
    %875 = vset.pattern.permute.xlu0 0
    %876 = vperm.xlu0 %875, %v854
    %v877 = vpop.permute.xlu0 %876
    %880 = vset.pattern.permute.xlu0 0
    %881 = vperm.xlu0 %880, %v855
    %v882 = vpop.permute.xlu0 %881
    %885 = vset.pattern.permute.xlu0 0
    %886 = vperm.xlu0 %885, %v856
    %v887 = vpop.permute.xlu0 %886
    %890 = vset.pattern.permute.xlu0 0
    %891 = vperm.xlu0 %890, %v857
    %v892 = vpop.permute.xlu0 %891
    %895 = vset.pattern.permute.xlu0 0
    %896 = vperm.xlu0 %895, %v858
    %v897 = vpop.permute.xlu0 %896
    %900 = vset.pattern.permute.xlu0 0
    %901 = vperm.xlu0 %900, %v859
    %v902 = vpop.permute.xlu0 %901
    %905 = vset.pattern.permute.xlu0 0
    %906 = vperm.xlu0 %905, %v860
    %v907 = vpop.permute.xlu0 %906
    %910 = vset.pattern.permute.xlu0 0
    %911 = vperm.xlu0 %910, %v861
    %v912 = vpop.permute.xlu0 %911
    %915 = vset.pattern.permute.xlu0 0
    %916 = vperm.xlu0 %915, %v862
    %v917 = vpop.permute.xlu0 %916
    %920 = vset.pattern.permute.xlu0 0
    %921 = vperm.xlu0 %920, %v863
    %v922 = vpop.permute.xlu0 %921
    %925 = vset.pattern.permute.xlu0 0
    %926 = vperm.xlu0 %925, %v864
    %v927 = vpop.permute.xlu0 %926
    %930 = vset.pattern.permute.xlu0 0
    %931 = vperm.xlu0 %930, %v865
    %v932 = vpop.permute.xlu0 %931
    %935 = vset.pattern.permute.xlu0 0
    %936 = vperm.xlu0 %935, %v866
    %v937 = vpop.permute.xlu0 %936
    %940 = vset.pattern.permute.xlu0 0
    %941 = vperm.xlu0 %940, %v867
    %v942 = vpop.permute.xlu0 %941
    %945 = vset.pattern.permute.xlu0 0
    %946 = vperm.xlu0 %945, %v868
    %v947 = vpop.permute.xlu0 %946
    %v949 = vmul.f32 %v872, %v488
    %v950 = vmul.f32 %v877, %v489
    %v951 = vmul.f32 %v882, %v490
    %v952 = vmul.f32 %v887, %v491
    %v953 = vmul.f32 %v892, %v492
    %v954 = vmul.f32 %v897, %v493
    %v955 = vmul.f32 %v902, %v494
    %v956 = vmul.f32 %v907, %v495
    %v957 = vmul.f32 %v912, %v496
    %v958 = vmul.f32 %v917, %v497
    %v959 = vmul.f32 %v922, %v498
    %v960 = vmul.f32 %v927, %v499
    %v961 = vmul.f32 %v932, %v500
    %v962 = vmul.f32 %v937, %v501
    %v963 = vmul.f32 %v942, %v502
    %v964 = vmul.f32 %v947, %v503
    %v965 = vsel %vm378, %v949, 0.0
    %v966 = vsel %vm378, %v950, 0.0
    %v967 = vadd.f32 %v965, %v966
    %v968 = vrot.slane %v967, 4
    %v969 = vadd.f32 %v967, %v968
    %v970 = vrot.slane %v969, 2
    %v971 = vadd.f32 %v969, %v970
    %v972 = vrot.slane %v971, 1
    %v973 = vadd.f32 %v971, %v972
    %v974 = vsel %vm378, %v951, 0.0
    %v975 = vsel %vm378, %v952, 0.0
    %v976 = vadd.f32 %v974, %v975
    %v977 = vrot.slane %v976, 4
    %v978 = vadd.f32 %v976, %v977
    %v979 = vrot.slane %v978, 2
    %v980 = vadd.f32 %v978, %v979
    %v981 = vrot.slane %v980, 1
    %v982 = vadd.f32 %v980, %v981
    %v983 = vsel %vm378, %v953, 0.0
    %v984 = vsel %vm378, %v954, 0.0
    %v985 = vadd.f32 %v983, %v984
    %v986 = vrot.slane %v985, 4
    %v987 = vadd.f32 %v985, %v986
    %v988 = vrot.slane %v987, 2
    %v989 = vadd.f32 %v987, %v988
    %v990 = vrot.slane %v989, 1
    %v991 = vadd.f32 %v989, %v990
    %v992 = vsel %vm378, %v955, 0.0
    %v993 = vsel %vm378, %v956, 0.0
    %v994 = vadd.f32 %v992, %v993
    %v995 = vrot.slane %v994, 4
    %v996 = vadd.f32 %v994, %v995
    %v997 = vrot.slane %v996, 2
    %v998 = vadd.f32 %v996, %v997
    %v999 = vrot.slane %v998, 1
    %v1000 = vadd.f32 %v998, %v999
    %v1001 = vsel %vm378, %v957, 0.0
    %v1002 = vsel %vm378, %v958, 0.0
    %v1003 = vadd.f32 %v1001, %v1002
    %v1004 = vrot.slane %v1003, 4
    %v1005 = vadd.f32 %v1003, %v1004
    %v1006 = vrot.slane %v1005, 2
    %v1007 = vadd.f32 %v1005, %v1006
    %v1008 = vrot.slane %v1007, 1
    %v1009 = vadd.f32 %v1007, %v1008
    %v1010 = vsel %vm378, %v959, 0.0
    %v1011 = vsel %vm378, %v960, 0.0
    %v1012 = vadd.f32 %v1010, %v1011
    %v1013 = vrot.slane %v1012, 4
    %v1014 = vadd.f32 %v1012, %v1013
    %v1015 = vrot.slane %v1014, 2
    %v1016 = vadd.f32 %v1014, %v1015
    %v1017 = vrot.slane %v1016, 1
    %v1018 = vadd.f32 %v1016, %v1017
    %v1019 = vsel %vm378, %v961, 0.0
    %v1020 = vsel %vm378, %v962, 0.0
    %v1021 = vadd.f32 %v1019, %v1020
    %v1022 = vrot.slane %v1021, 4
    %v1023 = vadd.f32 %v1021, %v1022
    %v1024 = vrot.slane %v1023, 2
    %v1025 = vadd.f32 %v1023, %v1024
    %v1026 = vrot.slane %v1025, 1
    %v1027 = vadd.f32 %v1025, %v1026
    %v1028 = vsel %vm378, %v963, 0.0
    %v1029 = vsel %vm378, %v964, 0.0
    %v1030 = vadd.f32 %v1028, %v1029
    %v1031 = vrot.slane %v1030, 4
    %v1032 = vadd.f32 %v1030, %v1031
    %v1033 = vrot.slane %v1032, 2
    %v1034 = vadd.f32 %v1032, %v1033
    %v1035 = vrot.slane %v1034, 1
    %v1036 = vadd.f32 %v1034, %v1035
    %v1045 = vsel %vm652, %v982, %v973
    %v1046 = vsel %vm654, %v991, %v1045
    %v1047 = vsel %vm656, %v1000, %v1046
    %v1048 = vsel %vm658, %v1009, %v1047
    %v1049 = vsel %vm660, %v1018, %v1048
    %v1050 = vsel %vm662, %v1027, %v1049
    %v1051 = vsel %vm664, %v1036, %v1050
    %1053 = vst.msk [vmem:[#allocation9] sm:$0xff] %vm378, %v1051
    %1054 = vrot.lane.b32.xlu0 %v487, 32
    %v1055 = vpop.permute.xlu0 %1054
    %1057 = vst.msk [vmem:[#allocation9 + $0x8] sm:$0xff] %vm378, %v1055
    %1058 = vst.msk [vmem:[#allocation10] sm:$0xff] %vm378, %v1055
    %1060 = vrot.lane.b32.xlu0 %v481, 96
    %v1061 = vpop.permute.xlu0 %1060
    %1063 = vst.msk [vmem:[#allocation10 + $0x8] sm:$0xff] %vm378, %v1061
    %v1064 = vperm.slane %v872, %v625
    %v1065 = vperm.slane %v877, %v627
    %v1066 = vsel %vm629, %v1065, %v1064
    %v1067 = vperm.slane %v882, %v625
    %v1068 = vperm.slane %v887, %v627
    %v1069 = vsel %vm629, %v1068, %v1067
    %v1070 = vperm.slane %v892, %v625
    %v1071 = vperm.slane %v897, %v627
    %v1072 = vsel %vm629, %v1071, %v1070
    %v1073 = vperm.slane %v902, %v625
    %v1074 = vperm.slane %v907, %v627
    %v1075 = vsel %vm629, %v1074, %v1073
    %v1076 = vperm.slane %v912, %v625
    %v1077 = vperm.slane %v917, %v627
    %v1078 = vsel %vm629, %v1077, %v1076
    %v1079 = vperm.slane %v922, %v625
    %v1080 = vperm.slane %v927, %v627
    %v1081 = vsel %vm629, %v1080, %v1079
    %v1082 = vperm.slane %v932, %v625
    %v1083 = vperm.slane %v937, %v627
    %v1084 = vsel %vm629, %v1083, %v1082
    %v1085 = vperm.slane %v942, %v625
    %v1086 = vperm.slane %v947, %v627
    %v1087 = vsel %vm629, %v1086, %v1085
    %v1088 = vsel %vm652, %v1069, %v1066
    %v1089 = vsel %vm654, %v1072, %v1088
    %v1090 = vsel %vm656, %v1075, %v1089
    %v1091 = vsel %vm658, %v1078, %v1090
    %v1092 = vsel %vm660, %v1081, %v1091
    %v1093 = vsel %vm662, %v1084, %v1092
    %v1094 = vsel %vm664, %v1087, %v1093
    %1096 = vst.msk [vmem:[#allocation12] sm:$0xff] %vm667, %v1094
    // Predicated region
    $region270: #{tpu_custom_call.1} parent=1 // pred_check
      _
    $region271: #{tpu_custom_call.1} parent=1 // pred_check_branch
      %1098 = sbr.rel (0) target = $region273
    $region272: #{tpu_custom_call.1} parent=1 // pred_region
      %1100 = vsyncadd [#allocation8], 0
      %s1102 = sshll.u32 [#allocation9], 4
      %s1103 = int_to_ptr.vmem [resolvable:$true] %s1102
      %s1104 = sshll.u32 %s8, 4
      %s1105 = int_to_ptr.hbm [resolvable:$true] %s1104
      %1107 = dma.vmem_to_hbm [thread:$0]  %s1103, 256, %s1105, [#allocation8]
    $region273: #{tpu_custom_call.1} parent=1 // pred_fallthru
      _
    // Predicated region
    $region274: #{tpu_custom_call.1} parent=1 // pred_check
      _
    $region275: #{tpu_custom_call.1} parent=1 // pred_check_branch
      %1109 = sbr.rel (0) target = $region277
    $region276: #{tpu_custom_call.1} parent=1 // pred_region
      %1111 = vsyncadd [#allocation11], 0
      %s1113 = sshll.u32 [#allocation10], 4
      %s1114 = int_to_ptr.vmem [resolvable:$true] %s1113
      %s1115 = sshll.u32 %s9, 4
      %s1116 = int_to_ptr.hbm [resolvable:$true] %s1115
      %1118 = dma.vmem_to_hbm [thread:$0]  %s1114, 256, %s1116, [#allocation11]
    $region277: #{tpu_custom_call.1} parent=1 // pred_fallthru
      _
    // Predicated region
    $region278: #{tpu_custom_call.1} parent=1 // pred_check
      _
    $region279: #{tpu_custom_call.1} parent=1 // pred_check_branch
      %1120 = sbr.rel (0) target = $region281
    $region280: #{tpu_custom_call.1} parent=1 // pred_region
      %1122 = vsyncadd [#allocation11], 0
      %s1124 = sshll.u32 [#allocation12], 4
      %s1125 = int_to_ptr.vmem [resolvable:$true] %s1124
      %s1126 = sshll.u32 %s10, 4
      %s1127 = int_to_ptr.hbm [resolvable:$true] %s1126
      %1129 = dma.vmem_to_hbm [thread:$0]  %s1125, 128, %s1127, [#allocation11]
    $region281: #{tpu_custom_call.1} parent=1 // pred_fallthru
      _
    // Predicated region
    $region282: #{tpu_custom_call.1} parent=1 // pred_check
      _
    $region283: #{tpu_custom_call.1} parent=1 // pred_check_branch
      %1131 = sbr.rel (0) target = $region285
    $region284: #{tpu_custom_call.1} parent=1 // pred_region
      %1133 = dma.done [#allocation8], 256
    $region285: #{tpu_custom_call.1} parent=1 // pred_fallthru
      _
    // Predicated region
    $region286: #{tpu_custom_call.1} parent=1 // pred_check
      _
    $region287: #{tpu_custom_call.1} parent=1 // pred_check_branch
      %1135 = sbr.rel (0) target = $region289
    $region288: #{tpu_custom_call.1} parent=1 // pred_region
      %1137 = dma.done [#allocation11], 256
    $region289: #{tpu_custom_call.1} parent=1 // pred_fallthru
      _
    // Predicated region
    $region290: #{tpu_custom_call.1} parent=1 // pred_check
      _
    $region291: #{tpu_custom_call.1} parent=1 // pred_check_branch
      %1139 = sbr.rel (0) target = $region293
    $region292: #{tpu_custom_call.1} parent=1 // pred_region
      %1141 = dma.done [#allocation11], 128
    $region293: #{tpu_custom_call.1} parent=1 // pred_fallthru
      _
    %1142 = vsyncpa [#allocation7], 1
    %1143 = vsyncpa [#allocation8], 1
    %1144 = vsyncpa [#allocation11], 1
  %1145 = vsyncmov [#allocation3]
  %s1146 = vpop.sfrf %1145
  %p1147 = scmp.eq.s32.totalorder %s1146, 0
  %p1148 = pneg %p1147
  %1150 = shalt.err (%p1148)

</llo_original>
